<compile_context>
chip_gen: v6e
topology: v6e:2x2x1
jax: 0.10.0
libtpu: 0.0.40
codegen_flags: <defaults>
</compile_context>

<pallas_src>
import functools

import jax
import jax.numpy as jnp
from jax.experimental import pallas as pl
from jax.experimental.pallas import tpu as pltpu


def _channel_mixing_kernel(x_ref, ln_w_ref, ln_b_ref,
                           w1_ref, b1_ref, w2_ref, b2_ref,
                           o_ref, *, eps):
    # x_ref: (tm, C) tile of the flattened (rows_padded, C) input, native dtype.
    x_in = x_ref[...]

    # Hoisted parameter loads (one load / broadcast each, outside the hot math).
    ln_w = ln_w_ref[...]          # (1, C) f32
    ln_b = ln_b_ref[...]          # (1, C) f32
    b1 = b1_ref[...]              # (1, H) f32
    b2 = b2_ref[...]              # (1, C) f32

    # --- LayerNorm over the channel axis (stats in f32, matches nn.LayerNorm) ---
    xf = x_in.astype(jnp.float32)
    mean = jnp.mean(xf, axis=-1, keepdims=True)
    centered = xf - mean
    var = jnp.mean(centered * centered, axis=-1, keepdims=True)
    xn = centered * jax.lax.rsqrt(var + eps)
    xn = xn * ln_w + ln_b

    # --- Linear(dim -> dim*expansion): operands in weight dtype (bf16 weights
    #     -> bf16 MXU passes), f32 accumulation. b1 add fused here. ---
    h = jnp.dot(xn.astype(w1_ref.dtype), w1_ref[...],
                preferred_element_type=jnp.float32) + b1

    # --- GELU (exact erf form = PyTorch nn.GELU default) ---
    h = 0.5 * h * (1.0 + jax.lax.erf(h * 0.7071067811865476))

    # --- Dropout(p) is identity at inference / p = 0.0 ---
    # TODO(synk): training-mode dropout (pltpu.prng_*) not implemented; p=0 here.

    # --- Linear(dim*expansion -> dim), f32 accumulation ---
    y = jnp.dot(h.astype(w2_ref.dtype), w2_ref[...],
                preferred_element_type=jnp.float32) + b2

    # --- Residual add from the native-dtype tile, cast once at the store ---
    o_ref[...] = (y + x_in.astype(jnp.float32)).astype(o_ref.dtype)


def _vmem_limit_bytes(row_tile, C, H, x_itemsize, w_itemsize):
    """Conservative scoped-VMEM budget for the pipeline (safe for v7x's 64 MiB)."""
    io = 2 * 2 * row_tile * C * x_itemsize                    # x + out tiles, double-buffered
    weights = 2 * ((C * H + H * C) * w_itemsize + (2 * C + 2 * H) * 4)
    live = 3 * row_tile * (C + H) * 4                         # f32 intermediates headroom
    est = io + weights + live
    return int(min(max(2 * est, 8 << 20), 64 << 20))


def channel_mixing(x, ln_w, ln_b, w1, b1, w2, b2, *, eps=1e-5, row_tile=None):
    """x: (B, T, C). Weights follow y = x @ W + b (W already transposed from
    PyTorch's (out, in) layout). Weight dtype is respected (pass bf16 weights
    for bf16 MXU passes); LN stats and accumulation stay f32."""
    B, T, C = x.shape
    Cw, H = w1.shape
    assert Cw == C and w2.shape == (H, C)
    rows = B * T
    x2d = x.reshape(rows, C)

    x_itemsize = jnp.dtype(x.dtype).itemsize
    sublane = 8 if x_itemsize >= 4 else 16

    if row_tile is None:
        # Pipeline-friendly default: many grid steps, large enough tiles to
        # approach the HBM roofline (measured ~85% at 512-row f32 tiles).
        target = 512 if x_itemsize >= 4 else 1024
        row_tile = min(target, rows)
    # Sublane alignment (8 rows for 32-bit, 16 for 16-bit inputs).
    row_tile = max(sublane, ((row_tile + sublane - 1) // sublane) * sublane)
    assert row_tile % sublane == 0

    # Pad rows to a tile multiple so every grid step sees a full tile.
    num_tiles = pl.cdiv(rows, row_tile)
    rows_p = num_tiles * row_tile
    if rows_p != rows:
        x2d = jnp.pad(x2d, ((0, rows_p - rows), (0, 0)))
    grid = (num_tiles,)

    # 1-D params as (1, dim) f32 rows (tiny; broadcast on sublanes in-kernel).
    ln_w2 = ln_w.reshape(1, C).astype(jnp.float32)
    ln_b2 = ln_b.reshape(1, C).astype(jnp.float32)
    b1_2 = b1.reshape(1, H).astype(jnp.float32)
    b2_2 = b2.reshape(1, C).astype(jnp.float32)

    full = lambda i: (0, 0)
    w_itemsize = jnp.dtype(w1.dtype).itemsize
    vmem_limit = _vmem_limit_bytes(row_tile, C, H, x_itemsize, w_itemsize)

    out2d = pl.pallas_call(
        functools.partial(_channel_mixing_kernel, eps=eps),
        out_shape=jax.ShapeDtypeStruct((rows_p, C), x.dtype),
        grid_spec=pltpu.PrefetchScalarGridSpec(
            num_scalar_prefetch=0,
            grid=grid,
            in_specs=[
                pl.BlockSpec((row_tile, C), lambda i: (i, 0)),   # x tile
                pl.BlockSpec((1, C), full),                      # LN weight
                pl.BlockSpec((1, C), full),                      # LN bias
                pl.BlockSpec((C, H), full),                      # W1 (grid-invariant)
                pl.BlockSpec((1, H), full),                      # b1
                pl.BlockSpec((H, C), full),                      # W2 (grid-invariant)
                pl.BlockSpec((1, C), full),                      # b2
            ],
            out_specs=pl.BlockSpec((row_tile, C), lambda i: (i, 0)),
        ),
        compiler_params=pltpu.CompilerParams(
            dimension_semantics=("parallel",),
            vmem_limit_bytes=vmem_limit,
        ),
    )(x2d, ln_w2, ln_b2, w1, b1_2, w2, b2_2)

    if rows_p != rows:
        out2d = out2d[:rows]
    return out2d.reshape(B, T, C)


def _reference(x, ln_w, ln_b, w1, b1, w2, b2, eps=1e-5):
    xf = x.astype(jnp.float32)
    mean = jnp.mean(xf, axis=-1, keepdims=True)
    var = jnp.mean((xf - mean) ** 2, axis=-1, keepdims=True)
    xn = (xf - mean) * jax.lax.rsqrt(var + eps) * ln_w + ln_b
    h = xn @ w1 + b1
    h = 0.5 * h * (1.0 + jax.lax.erf(h / jnp.sqrt(2.0)))
    y = h @ w2 + b2
    return (y + xf).astype(x.dtype)


if __name__ == "__main__":
    # Config consistent with the module: (b, t, c) with expansion_factor = 4.
    # rows = B*T = 2048 -> default row_tile = 512 -> grid = (4,) (even, so both
    # v7x TensorCores get work and the BlockSpec pipeline has steps to overlap).
    B, T, C = 4, 512, 32
    EXP = 4
    H = C * EXP

    key = jax.random.PRNGKey(0)
    kx, k1, k2, k3, k4, k5, k6 = jax.random.split(key, 7)

    x = jax.random.normal(kx, (B, T, C), dtype=jnp.float32)

    # Deterministic synthetic parameters (not a checkpoint load).
    ln_w = 1.0 + 0.01 * jax.random.normal(k1, (C,), dtype=jnp.float32)
    ln_b = 0.01 * jax.random.normal(k2, (C,), dtype=jnp.float32)
    w1 = 0.05 * jax.random.normal(k3, (C, H), dtype=jnp.float32)   # y = x @ W1 + b1
    b1 = 0.01 * jax.random.normal(k4, (H,), dtype=jnp.float32)
    w2 = 0.05 * jax.random.normal(k5, (H, C), dtype=jnp.float32)   # y = h @ W2 + b2
    b2 = 0.01 * jax.random.normal(k6, (C,), dtype=jnp.float32)

    out = channel_mixing(x, ln_w, ln_b, w1, b1, w2, b2)
    out = jax.block_until_ready(out)

    ref = _reference(x, ln_w, ln_b, w1, b1, w2, b2)
    assert out.shape == (B, T, C)
    assert jnp.allclose(out, ref, atol=5e-4, rtol=5e-4), "mismatch vs reference"

    print("KERNEL_OK")
</pallas_src>

<mosaic_0001>
module attributes {stable_mosaic.version = 11 : i64} {
  func.func @_channel_mixing_kernel(%arg0: i32, %arg1: memref<512x32xf32, #tpu.memory_space<vmem>>, %arg2: memref<1x32xf32, #tpu.memory_space<vmem>>, %arg3: memref<1x32xf32, #tpu.memory_space<vmem>>, %arg4: memref<32x128xf32, #tpu.memory_space<vmem>>, %arg5: memref<1x128xf32, #tpu.memory_space<vmem>>, %arg6: memref<128x32xf32, #tpu.memory_space<vmem>>, %arg7: memref<1x32xf32, #tpu.memory_space<vmem>>, %arg8: memref<512x32xf32, #tpu.memory_space<vmem>>) attributes {dimension_semantics = [#tpu.dimension_semantics<parallel>], iteration_bounds = array<i64: 4>, scalar_prefetch = 0 : i64, scratch_operands = 0 : i64, tpu.core_type = #tpu.core_type<tc>, window_params = [{transform_indices = @transform_0, window_bounds = array<i64: 512, 32>}, {pipeline_mode = #tpu.pipeline_mode<synchronous>, transform_indices = @transform_1, window_bounds = array<i64: 1, 32>}, {pipeline_mode = #tpu.pipeline_mode<synchronous>, transform_indices = @transform_2, window_bounds = array<i64: 1, 32>}, {pipeline_mode = #tpu.pipeline_mode<synchronous>, transform_indices = @transform_3, window_bounds = array<i64: 32, 128>}, {pipeline_mode = #tpu.pipeline_mode<synchronous>, transform_indices = @transform_4, window_bounds = array<i64: 1, 128>}, {pipeline_mode = #tpu.pipeline_mode<synchronous>, transform_indices = @transform_5, window_bounds = array<i64: 128, 32>}, {pipeline_mode = #tpu.pipeline_mode<synchronous>, transform_indices = @transform_6, window_bounds = array<i64: 1, 32>}, {transform_indices = @transform_7, window_bounds = array<i64: 512, 32>}]} {
    %c0 = arith.constant 0 : index
    %c0_0 = arith.constant 0 : index
    %0 = vector.load %arg1[%c0, %c0_0] : memref<512x32xf32, #tpu.memory_space<vmem>>, vector<512x32xf32>
    %c0_1 = arith.constant 0 : index
    %c0_2 = arith.constant 0 : index
    %1 = vector.load %arg2[%c0_1, %c0_2] : memref<1x32xf32, #tpu.memory_space<vmem>>, vector<1x32xf32>
    %c0_3 = arith.constant 0 : index
    %c0_4 = arith.constant 0 : index
    %2 = vector.load %arg3[%c0_3, %c0_4] : memref<1x32xf32, #tpu.memory_space<vmem>>, vector<1x32xf32>
    %c0_5 = arith.constant 0 : index
    %c0_6 = arith.constant 0 : index
    %3 = vector.load %arg5[%c0_5, %c0_6] : memref<1x128xf32, #tpu.memory_space<vmem>>, vector<1x128xf32>
    %c0_7 = arith.constant 0 : index
    %c0_8 = arith.constant 0 : index
    %4 = vector.load %arg7[%c0_7, %c0_8] : memref<1x32xf32, #tpu.memory_space<vmem>>, vector<1x32xf32>
    %cst = arith.constant dense<0.000000e+00> : vector<512xf32>
    %5 = vector.multi_reduction <add>, %0, %cst [1] : vector<512x32xf32> to vector<512xf32>
    %6 = vector.shape_cast %5 : vector<512xf32> to vector<512x1xf32>
    %cst_9 = arith.constant 3.200000e+01 : f32
    %7 = vector.broadcast %cst_9 : f32 to vector<512x1xf32>
    %8 = arith.divf %6, %7 : vector<512x1xf32>
    %9 = vector.broadcast %8 : vector<512x1xf32> to vector<512x32xf32>
    %10 = arith.subf %0, %9 : vector<512x32xf32>
    %11 = arith.mulf %10, %10 : vector<512x32xf32>
    %cst_10 = arith.constant dense<0.000000e+00> : vector<512xf32>
    %12 = vector.multi_reduction <add>, %11, %cst_10 [1] : vector<512x32xf32> to vector<512xf32>
    %13 = vector.shape_cast %12 : vector<512xf32> to vector<512x1xf32>
    %cst_11 = arith.constant 3.200000e+01 : f32
    %14 = vector.broadcast %cst_11 : f32 to vector<512x1xf32>
    %15 = arith.divf %13, %14 : vector<512x1xf32>
    %cst_12 = arith.constant 9.99999974E-6 : f32
    %16 = vector.broadcast %cst_12 : f32 to vector<512x1xf32>
    %17 = arith.addf %15, %16 : vector<512x1xf32>
    %18 = math.rsqrt %17 : vector<512x1xf32>
    %19 = vector.broadcast %18 : vector<512x1xf32> to vector<512x32xf32>
    %20 = arith.mulf %10, %19 : vector<512x32xf32>
    %21 = vector.broadcast %1 : vector<1x32xf32> to vector<512x32xf32>
    %22 = arith.mulf %20, %21 : vector<512x32xf32>
    %23 = vector.broadcast %2 : vector<1x32xf32> to vector<512x32xf32>
    %24 = arith.addf %22, %23 : vector<512x32xf32>
    %c0_13 = arith.constant 0 : index
    %c0_14 = arith.constant 0 : index
    %25 = vector.load %arg4[%c0_13, %c0_14] : memref<32x128xf32, #tpu.memory_space<vmem>>, vector<32x128xf32>
    %cst_15 = arith.constant dense<0.000000e+00> : vector<512x128xf32>
    %26 = tpu.matmul %24, %25, %cst_15 {dimension_numbers = #tpu.dot_dimension_numbers<[1], [0], [0], [1], [0, 0, 1, 1], [], []>} : vector<512x32xf32>, vector<32x128xf32>, vector<512x128xf32> -> vector<512x128xf32>
    %27 = vector.broadcast %3 : vector<1x128xf32> to vector<512x128xf32>
    %28 = arith.addf %26, %27 : vector<512x128xf32>
    %cst_16 = arith.constant 5.000000e-01 : f32
    %29 = vector.broadcast %cst_16 : f32 to vector<512x128xf32>
    %30 = arith.mulf %29, %28 : vector<512x128xf32>
    %cst_17 = arith.constant 0.707106769 : f32
    %31 = vector.broadcast %cst_17 : f32 to vector<512x128xf32>
    %32 = arith.mulf %28, %31 : vector<512x128xf32>
    %33 = math.erf %32 : vector<512x128xf32>
    %cst_18 = arith.constant 1.000000e+00 : f32
    %34 = vector.broadcast %cst_18 : f32 to vector<512x128xf32>
    %35 = arith.addf %34, %33 : vector<512x128xf32>
    %36 = arith.mulf %30, %35 : vector<512x128xf32>
    %c0_19 = arith.constant 0 : index
    %c0_20 = arith.constant 0 : index
    %37 = vector.load %arg6[%c0_19, %c0_20] : memref<128x32xf32, #tpu.memory_space<vmem>>, vector<128x32xf32>
    %cst_21 = arith.constant dense<0.000000e+00> : vector<512x32xf32>
    %38 = tpu.matmul %36, %37, %cst_21 {dimension_numbers = #tpu.dot_dimension_numbers<[1], [0], [0], [1], [0, 0, 1, 1], [], []>} : vector<512x128xf32>, vector<128x32xf32>, vector<512x32xf32> -> vector<512x32xf32>
    %39 = vector.broadcast %4 : vector<1x32xf32> to vector<512x32xf32>
    %40 = arith.addf %38, %39 : vector<512x32xf32>
    %41 = arith.addf %40, %0 : vector<512x32xf32>
    %c0_22 = arith.constant 0 : index
    %c0_23 = arith.constant 0 : index
    %42 = vector.load %arg8[%c0_22, %c0_23] : memref<512x32xf32, #tpu.memory_space<vmem>>, vector<512x32xf32>
    tpu.vector_store %arg8[%c0_22, %c0_23], %41 {strides = array<i32>} : memref<512x32xf32, #tpu.memory_space<vmem>>, vector<512x32xf32>,
    return
  }
  func.func @transform_0(%arg0: i32) -> (i32, i32) {
    %c0_i32 = arith.constant 0 : i32
    %c0_i32_0 = arith.constant 0 : i32
    return %arg0, %c0_i32 : i32, i32
  }
  func.func @transform_1(%arg0: i32) -> (i32, i32) {
    %c0_i32 = arith.constant 0 : i32
    %c0_i32_0 = arith.constant 0 : i32
    %c0_i32_1 = arith.constant 0 : i32
    return %c0_i32, %c0_i32_0 : i32, i32
  }
  func.func @transform_2(%arg0: i32) -> (i32, i32) {
    %c0_i32 = arith.constant 0 : i32
    %c0_i32_0 = arith.constant 0 : i32
    %c0_i32_1 = arith.constant 0 : i32
    return %c0_i32, %c0_i32_0 : i32, i32
  }
  func.func @transform_3(%arg0: i32) -> (i32, i32) {
    %c0_i32 = arith.constant 0 : i32
    %c0_i32_0 = arith.constant 0 : i32
    %c0_i32_1 = arith.constant 0 : i32
    return %c0_i32, %c0_i32_0 : i32, i32
  }
  func.func @transform_4(%arg0: i32) -> (i32, i32) {
    %c0_i32 = arith.constant 0 : i32
    %c0_i32_0 = arith.constant 0 : i32
    %c0_i32_1 = arith.constant 0 : i32
    return %c0_i32, %c0_i32_0 : i32, i32
  }
  func.func @transform_5(%arg0: i32) -> (i32, i32) {
    %c0_i32 = arith.constant 0 : i32
    %c0_i32_0 = arith.constant 0 : i32
    %c0_i32_1 = arith.constant 0 : i32
    return %c0_i32, %c0_i32_0 : i32, i32
  }
  func.func @transform_6(%arg0: i32) -> (i32, i32) {
    %c0_i32 = arith.constant 0 : i32
    %c0_i32_0 = arith.constant 0 : i32
    %c0_i32_1 = arith.constant 0 : i32
    return %c0_i32, %c0_i32_0 : i32, i32
  }
  func.func @transform_7(%arg0: i32) -> (i32, i32) {
    %c0_i32 = arith.constant 0 : i32
    %c0_i32_0 = arith.constant 0 : i32
    return %arg0, %c0_i32 : i32, i32
  }
}

</mosaic_0001>

<llo_original>
// kernel: tpu_custom_call.1
$region0: #{tpu_custom_call.1}
  #allocation0 [shape = 'u32[]', space=smem, size = 0x4, offset = 0x4, fixed_abs, tag = 'smem constant byte address 0x4 - core index']
  #allocation1 [shape = 'u32[144,128]{1,0:T(1,128)}', space=vmem, size = 0x12000, scoped, tag = 'internal scratch']
  %s0 = inlined_call_operand.vmem [shape: f32[2048,32], index: 0, kind: input, shape index: {}]
  %s1 = inlined_call_operand.vmem [shape: f32[1,32], index: 1, kind: input, shape index: {}]
  %s2 = inlined_call_operand.vmem [shape: f32[1,32], index: 2, kind: input, shape index: {}]
  %s3 = inlined_call_operand.vmem [shape: f32[32,128], index: 3, kind: input, shape index: {}]
  %s4 = inlined_call_operand.vmem [shape: f32[1,128], index: 4, kind: input, shape index: {}]
  %s5 = inlined_call_operand.vmem [shape: f32[128,32], index: 5, kind: input, shape index: {}]
  %s6 = inlined_call_operand.vmem [shape: f32[1,32], index: 6, kind: input, shape index: {}]
  %s7 = inlined_call_operand.vmem [shape: f32[2048,32], index: 7, kind: output, shape index: {}]
  %s8 = sld [smem:[#allocation0]]
  $region61: #{tpu_custom_call.1} parent=0
    _
  %s10 = ssub.s32 1, %s8
  %s11 = scalar_select 0, %s10, %s8
  loop: start=0, step=1, limit=6
  $region2: #{tpu_custom_call.1} parent=0 // loop_pre_header
    _
  $region3: #{tpu_custom_call.1} parent=0 // loop_header
    %s13 = sphi 0, %s17
    %p14 = scmp.ge.s32.totalorder %s13, 6
    %s23 = sphi 0, %s25
    %s26 = sphi 0, %s23
    %s27 = sphi 0, %s26
    %s43 = sphi 0, %s27
    %s47 = sphi 0, %s47
    %s49 = sphi 0, %s47
    %s50 = sphi 0, %s49
    %s64 = sphi 0, %s50
    %s68 = sphi 0, %s68
    %s70 = sphi 0, %s68
    %s71 = sphi 0, %s70
    %s85 = sphi 0, %s71
    %s89 = sphi 0, %s89
    %s91 = sphi 0, %s89
    %s92 = sphi 0, %s91
    %s106 = sphi 0, %s92
    %s110 = sphi 0, %s110
    %s112 = sphi 0, %s110
    %s113 = sphi 0, %s112
    %s127 = sphi 0, %s113
    %s131 = sphi 0, %s131
    %s133 = sphi 0, %s131
    %s134 = sphi 0, %s133
    %s148 = sphi 0, %s134
    %s152 = sphi 0, %s152
    %s154 = sphi 0, %s152
    %s155 = sphi 0, %s154
    %s169 = sphi 0, %s155
    %s175 = sphi 0, %s177
    %s178 = sphi 0, %s175
    %s179 = sphi 0, %s178
    %s195 = sphi 0, %s179
  $region4: #{tpu_custom_call.1} parent=0 // loop_header_branch
    %16 = sbr.rel (%p14) target = $region8
  $region5: #{tpu_custom_call.1} parent=0 // loop_body
    %s18 = ssub.s32 %s13, 1
    %s19 = ssub.s32 %s13, 2
    %s20 = sadd.s32 %s13, 1
    %s21 = ssub.s32 %s13, %s20
    %p22 = scmp.eq.s32.totalorder %s21, 0
    %s24 = sadd.s32 %s23, 1
    %s25 = scalar_select %p22, %s23, %s24
    %p28 = pneg %p22
    %p29 = scmp.eq.s32.totalorder %s13, 3
    %p30 = por %p28, %p29
    %p31 = scmp.ne.s32.totalorder %s23, %s26
    %p32 = scmp.eq.s32.totalorder %s13, 0
    %p33 = por %p31, %p32
    %p34 = scmp.ne.s32.totalorder %s23, %s26
    %p35 = scmp.eq.s32.totalorder %s18, 3
    %p36 = por %p34, %p35
    %p37 = scmp.ne.s32.totalorder %s26, %s27
    %p38 = scmp.eq.s32.totalorder %s18, 0
    %p39 = por %p37, %p38
    %p40 = scmp.ne.s32.totalorder %s26, %s27
    %p41 = scmp.eq.s32.totalorder %s19, 3
    %p42 = por %p40, %p41
    %p44 = scmp.ne.s32.totalorder %s27, %s43
    %p45 = scmp.eq.s32.totalorder %s19, 0
    %p46 = por %p44, %p45
    %s48 = sadd.s32 %s47, 1
    %p51 = scmp.eq.s32.totalorder %s13, 3
    %p52 = scmp.ne.s32.totalorder %s47, %s49
    %p53 = scmp.eq.s32.totalorder %s13, 0
    %p54 = por %p52, %p53
    %p55 = scmp.ne.s32.totalorder %s47, %s49
    %p56 = scmp.eq.s32.totalorder %s18, 3
    %p57 = por %p55, %p56
    %p58 = scmp.ne.s32.totalorder %s49, %s50
    %p59 = scmp.eq.s32.totalorder %s18, 0
    %p60 = por %p58, %p59
    %p61 = scmp.ne.s32.totalorder %s49, %s50
    %p62 = scmp.eq.s32.totalorder %s19, 3
    %p63 = por %p61, %p62
    %p65 = scmp.ne.s32.totalorder %s50, %s64
    %p66 = scmp.eq.s32.totalorder %s19, 0
    %p67 = por %p65, %p66
    %s69 = sadd.s32 %s68, 1
    %p72 = scmp.eq.s32.totalorder %s13, 3
    %p73 = scmp.ne.s32.totalorder %s68, %s70
    %p74 = scmp.eq.s32.totalorder %s13, 0
    %p75 = por %p73, %p74
    %p76 = scmp.ne.s32.totalorder %s68, %s70
    %p77 = scmp.eq.s32.totalorder %s18, 3
    %p78 = por %p76, %p77
    %p79 = scmp.ne.s32.totalorder %s70, %s71
    %p80 = scmp.eq.s32.totalorder %s18, 0
    %p81 = por %p79, %p80
    %p82 = scmp.ne.s32.totalorder %s70, %s71
    %p83 = scmp.eq.s32.totalorder %s19, 3
    %p84 = por %p82, %p83
    %p86 = scmp.ne.s32.totalorder %s71, %s85
    %p87 = scmp.eq.s32.totalorder %s19, 0
    %p88 = por %p86, %p87
    %s90 = sadd.s32 %s89, 1
    %p93 = scmp.eq.s32.totalorder %s13, 3
    %p94 = scmp.ne.s32.totalorder %s89, %s91
    %p95 = scmp.eq.s32.totalorder %s13, 0
    %p96 = por %p94, %p95
    %p97 = scmp.ne.s32.totalorder %s89, %s91
    %p98 = scmp.eq.s32.totalorder %s18, 3
    %p99 = por %p97, %p98
    %p100 = scmp.ne.s32.totalorder %s91, %s92
    %p101 = scmp.eq.s32.totalorder %s18, 0
    %p102 = por %p100, %p101
    %p103 = scmp.ne.s32.totalorder %s91, %s92
    %p104 = scmp.eq.s32.totalorder %s19, 3
    %p105 = por %p103, %p104
    %p107 = scmp.ne.s32.totalorder %s92, %s106
    %p108 = scmp.eq.s32.totalorder %s19, 0
    %p109 = por %p107, %p108
    %s111 = sadd.s32 %s110, 1
    %p114 = scmp.eq.s32.totalorder %s13, 3
    %p115 = scmp.ne.s32.totalorder %s110, %s112
    %p116 = scmp.eq.s32.totalorder %s13, 0
    %p117 = por %p115, %p116
    %p118 = scmp.ne.s32.totalorder %s110, %s112
    %p119 = scmp.eq.s32.totalorder %s18, 3
    %p120 = por %p118, %p119
    %p121 = scmp.ne.s32.totalorder %s112, %s113
    %p122 = scmp.eq.s32.totalorder %s18, 0
    %p123 = por %p121, %p122
    %p124 = scmp.ne.s32.totalorder %s112, %s113
    %p125 = scmp.eq.s32.totalorder %s19, 3
    %p126 = por %p124, %p125
    %p128 = scmp.ne.s32.totalorder %s113, %s127
    %p129 = scmp.eq.s32.totalorder %s19, 0
    %p130 = por %p128, %p129
    %s132 = sadd.s32 %s131, 1
    %p135 = scmp.eq.s32.totalorder %s13, 3
    %p136 = scmp.ne.s32.totalorder %s131, %s133
    %p137 = scmp.eq.s32.totalorder %s13, 0
    %p138 = por %p136, %p137
    %p139 = scmp.ne.s32.totalorder %s131, %s133
    %p140 = scmp.eq.s32.totalorder %s18, 3
    %p141 = por %p139, %p140
    %p142 = scmp.ne.s32.totalorder %s133, %s134
    %p143 = scmp.eq.s32.totalorder %s18, 0
    %p144 = por %p142, %p143
    %p145 = scmp.ne.s32.totalorder %s133, %s134
    %p146 = scmp.eq.s32.totalorder %s19, 3
    %p147 = por %p145, %p146
    %p149 = scmp.ne.s32.totalorder %s134, %s148
    %p150 = scmp.eq.s32.totalorder %s19, 0
    %p151 = por %p149, %p150
    %s153 = sadd.s32 %s152, 1
    %p156 = scmp.eq.s32.totalorder %s13, 3
    %p157 = scmp.ne.s32.totalorder %s152, %s154
    %p158 = scmp.eq.s32.totalorder %s13, 0
    %p159 = por %p157, %p158
    %p160 = scmp.ne.s32.totalorder %s152, %s154
    %p161 = scmp.eq.s32.totalorder %s18, 3
    %p162 = por %p160, %p161
    %p163 = scmp.ne.s32.totalorder %s154, %s155
    %p164 = scmp.eq.s32.totalorder %s18, 0
    %p165 = por %p163, %p164
    %p166 = scmp.ne.s32.totalorder %s154, %s155
    %p167 = scmp.eq.s32.totalorder %s19, 3
    %p168 = por %p166, %p167
    %p170 = scmp.ne.s32.totalorder %s155, %s169
    %p171 = scmp.eq.s32.totalorder %s19, 0
    %p172 = por %p170, %p171
    %s173 = ssub.s32 %s13, %s20
    %p174 = scmp.eq.s32.totalorder %s173, 0
    %s176 = sadd.s32 %s175, 1
    %s177 = scalar_select %p174, %s175, %s176
    %p180 = pneg %p174
    %p181 = scmp.eq.s32.totalorder %s13, 3
    %p182 = por %p180, %p181
    %p183 = scmp.ne.s32.totalorder %s175, %s178
    %p184 = scmp.eq.s32.totalorder %s13, 0
    %p185 = por %p183, %p184
    %p186 = scmp.ne.s32.totalorder %s175, %s178
    %p187 = scmp.eq.s32.totalorder %s18, 3
    %p188 = por %p186, %p187
    %p189 = scmp.ne.s32.totalorder %s178, %s179
    %p190 = scmp.eq.s32.totalorder %s18, 0
    %p191 = por %p189, %p190
    %p192 = scmp.ne.s32.totalorder %s178, %s179
    %p193 = scmp.eq.s32.totalorder %s19, 3
    %p194 = por %p192, %p193
    %p196 = scmp.ne.s32.totalorder %s179, %s195
    %p197 = scmp.eq.s32.totalorder %s19, 0
    %p198 = por %p196, %p197
    %p199 = scmp.le.s32.totalorder 1, %s13
    %p200 = scmp.lt.s32.totalorder %s13, 5
    %p201 = pnand %p199, %p200
    %p202 = pneg %p201
    // Predicated region
    $region9: #{tpu_custom_call.1} parent=5 // pred_check
      _
    $region10: #{tpu_custom_call.1} parent=5 // pred_check_branch
      %204 = sbr.rel (%p201) target = $region12
    $region11: #{tpu_custom_call.1} parent=5 // pred_region
      %s205 = ssub.s32 %s13, 1
      // Predicated region
      $region13: #{tpu_custom_call.1} parent=11 // pred_check
        %p206 = pneg %p60
      $region14: #{tpu_custom_call.1} parent=11 // pred_check_branch
        %208 = sbr.rel (%p206) target = $region16
      $region15: #{tpu_custom_call.1} parent=11 // pred_region
        _
      $region16: #{tpu_custom_call.1} parent=11 // pred_fallthru
        _
      // Predicated region
      $region17: #{tpu_custom_call.1} parent=11 // pred_check
        %p209 = pneg %p81
      $region18: #{tpu_custom_call.1} parent=11 // pred_check_branch
        %211 = sbr.rel (%p209) target = $region20
      $region19: #{tpu_custom_call.1} parent=11 // pred_region
        _
      $region20: #{tpu_custom_call.1} parent=11 // pred_fallthru
        _
      // Predicated region
      $region21: #{tpu_custom_call.1} parent=11 // pred_check
        %p212 = pneg %p102
      $region22: #{tpu_custom_call.1} parent=11 // pred_check_branch
        %214 = sbr.rel (%p212) target = $region24
      $region23: #{tpu_custom_call.1} parent=11 // pred_region
        _
      $region24: #{tpu_custom_call.1} parent=11 // pred_fallthru
        _
      // Predicated region
      $region25: #{tpu_custom_call.1} parent=11 // pred_check
        %p215 = pneg %p123
      $region26: #{tpu_custom_call.1} parent=11 // pred_check_branch
        %217 = sbr.rel (%p215) target = $region28
      $region27: #{tpu_custom_call.1} parent=11 // pred_region
        _
      $region28: #{tpu_custom_call.1} parent=11 // pred_fallthru
        _
      // Predicated region
      $region29: #{tpu_custom_call.1} parent=11 // pred_check
        %p218 = pneg %p144
      $region30: #{tpu_custom_call.1} parent=11 // pred_check_branch
        %220 = sbr.rel (%p218) target = $region32
      $region31: #{tpu_custom_call.1} parent=11 // pred_region
        _
      $region32: #{tpu_custom_call.1} parent=11 // pred_fallthru
        _
      // Predicated region
      $region33: #{tpu_custom_call.1} parent=11 // pred_check
        %p221 = pneg %p165
      $region34: #{tpu_custom_call.1} parent=11 // pred_check_branch
        %223 = sbr.rel (%p221) target = $region36
      $region35: #{tpu_custom_call.1} parent=11 // pred_region
        _
      $region36: #{tpu_custom_call.1} parent=11 // pred_fallthru
        _
    $region12: #{tpu_custom_call.1} parent=5 // pred_fallthru
      _
    %p224 = scmp.lt.s32.totalorder %s13, 4
    // Predicated region
    $region37: #{tpu_custom_call.1} parent=5 // pred_check
      %p225 = pneg %p224
    $region38: #{tpu_custom_call.1} parent=5 // pred_check_branch
      %227 = sbr.rel (%p225) target = $region40
    $region39: #{tpu_custom_call.1} parent=5 // pred_region
      // Predicated region
      $region41: #{tpu_custom_call.1} parent=39 // pred_check
        %p228 = pneg %p33
      $region42: #{tpu_custom_call.1} parent=39 // pred_check_branch
        %230 = sbr.rel (%p228) target = $region44
      $region43: #{tpu_custom_call.1} parent=39 // pred_region
        %s231 = smul.u32 64, %s13
        %p232 = scmp.lt.s32.totalorder %s231, 255
        %s233 = scalar_select %p232, %s231, 255
        %s234 = smul.addr %s233, 8
        %s235 = scalar_lea.vmem %s0, %s234
        %s236 = smul.u32 64, %s13
      $region44: #{tpu_custom_call.1} parent=39 // pred_fallthru
        _
    $region40: #{tpu_custom_call.1} parent=5 // pred_fallthru
      _
    %p237 = scmp.le.s32.totalorder 1, %s13
    %p238 = scmp.lt.s32.totalorder %s13, 5
    %p239 = pnand %p237, %p238
    %p240 = pneg %p239
    // Predicated region
    $region45: #{tpu_custom_call.1} parent=5 // pred_check
      _
    $region46: #{tpu_custom_call.1} parent=5 // pred_check_branch
      %242 = sbr.rel (%p239) target = $region48
    $region47: #{tpu_custom_call.1} parent=5 // pred_region
      %s243 = ssub.s32 %s13, 1
      %s244 = smul.u32 64, %s18
      %p245 = scmp.lt.s32.totalorder %s244, 255
      %s246 = scalar_select %p245, %s244, 255
      %s247 = smul.addr %s246, 8
      %s248 = scalar_lea.vmem %s0, %s247
      %p249 = pneg %p39
      %p250 = pneg %p36
      %p251 = pneg %p60
      %p252 = pneg %p57
      %p253 = pneg %p81
      %p254 = pneg %p78
      %p255 = pneg %p102
      %p256 = pneg %p99
      %p257 = pneg %p123
      %p258 = pneg %p120
      %p259 = pneg %p144
      %p260 = pneg %p141
      %p261 = pneg %p165
      %p262 = pneg %p162
      %p263 = pneg %p191
      %p264 = pneg %p188
      %s265 = smul.u32 64, %s18
      %p266 = scmp.lt.s32.totalorder %s265, 255
      %s267 = scalar_select %p266, %s265, 255
      %s268 = smul.addr %s267, 8
      %s269 = scalar_lea.vmem %s7, %s268
      %s270 = smul.u32 64, %s18
      %p271 = scmp.lt.s32.totalorder %s270, 255
      %s272 = scalar_select %p271, %s270, 255
      %s273 = smul.addr %s272, 8
      %s274 = scalar_lea.vmem %s0, %s273
      %s275 = smul.u32 64, %s18
      %s276 = smul.u32 64, %s18
      %p277 = scmp.lt.s32.totalorder %s276, 255
      %s278 = scalar_select %p277, %s276, 255
      %s279 = smul.addr %s278, 8
      %s280 = scalar_lea.vmem %s7, %s279
      %s281 = smul.u32 64, %s18
      %v282 = vld [vmem:[%s274] sm:$0xff]
      %v283 = vld [vmem:[%s274 + $0x8] sm:$0xff]
      %v284 = vld [vmem:[%s274 + $0x10] sm:$0xff]
      %v285 = vld [vmem:[%s274 + $0x18] sm:$0xff]
      %v286 = vld [vmem:[%s274 + $0x20] sm:$0xff]
      %v287 = vld [vmem:[%s274 + $0x28] sm:$0xff]
      %v288 = vld [vmem:[%s274 + $0x30] sm:$0xff]
      %v289 = vld [vmem:[%s274 + $0x38] sm:$0xff]
      %v290 = vld [vmem:[%s274 + $0x40] sm:$0xff]
      %v291 = vld [vmem:[%s274 + $0x48] sm:$0xff]
      %v292 = vld [vmem:[%s274 + $0x50] sm:$0xff]
      %v293 = vld [vmem:[%s274 + $0x58] sm:$0xff]
      %v294 = vld [vmem:[%s274 + $0x60] sm:$0xff]
      %v295 = vld [vmem:[%s274 + $0x68] sm:$0xff]
      %v296 = vld [vmem:[%s274 + $0x70] sm:$0xff]
      %v297 = vld [vmem:[%s274 + $0x78] sm:$0xff]
      %v298 = vld [vmem:[%s274 + $0x80] sm:$0xff]
      %v299 = vld [vmem:[%s274 + $0x88] sm:$0xff]
      %v300 = vld [vmem:[%s274 + $0x90] sm:$0xff]
      %v301 = vld [vmem:[%s274 + $0x98] sm:$0xff]
      %v302 = vld [vmem:[%s274 + $0xa0] sm:$0xff]
      %v303 = vld [vmem:[%s274 + $0xa8] sm:$0xff]
      %v304 = vld [vmem:[%s274 + $0xb0] sm:$0xff]
      %v305 = vld [vmem:[%s274 + $0xb8] sm:$0xff]
      %v306 = vld [vmem:[%s274 + $0xc0] sm:$0xff]
      %v307 = vld [vmem:[%s274 + $0xc8] sm:$0xff]
      %v308 = vld [vmem:[%s274 + $0xd0] sm:$0xff]
      %v309 = vld [vmem:[%s274 + $0xd8] sm:$0xff]
      %v310 = vld [vmem:[%s274 + $0xe0] sm:$0xff]
      %v311 = vld [vmem:[%s274 + $0xe8] sm:$0xff]
      %v312 = vld [vmem:[%s274 + $0xf0] sm:$0xff]
      %v313 = vld [vmem:[%s274 + $0xf8] sm:$0xff]
      %v314 = vld [vmem:[%s274 + $0x100] sm:$0xff]
      %v315 = vld [vmem:[%s274 + $0x108] sm:$0xff]
      %v316 = vld [vmem:[%s274 + $0x110] sm:$0xff]
      %v317 = vld [vmem:[%s274 + $0x118] sm:$0xff]
      %v318 = vld [vmem:[%s274 + $0x120] sm:$0xff]
      %v319 = vld [vmem:[%s274 + $0x128] sm:$0xff]
      %v320 = vld [vmem:[%s274 + $0x130] sm:$0xff]
      %v321 = vld [vmem:[%s274 + $0x138] sm:$0xff]
      %v322 = vld [vmem:[%s274 + $0x140] sm:$0xff]
      %v323 = vld [vmem:[%s274 + $0x148] sm:$0xff]
      %v324 = vld [vmem:[%s274 + $0x150] sm:$0xff]
      %v325 = vld [vmem:[%s274 + $0x158] sm:$0xff]
      %v326 = vld [vmem:[%s274 + $0x160] sm:$0xff]
      %v327 = vld [vmem:[%s274 + $0x168] sm:$0xff]
      %v328 = vld [vmem:[%s274 + $0x170] sm:$0xff]
      %v329 = vld [vmem:[%s274 + $0x178] sm:$0xff]
      %v330 = vld [vmem:[%s274 + $0x180] sm:$0xff]
      %v331 = vld [vmem:[%s274 + $0x188] sm:$0xff]
      %v332 = vld [vmem:[%s274 + $0x190] sm:$0xff]
      %v333 = vld [vmem:[%s274 + $0x198] sm:$0xff]
      %v334 = vld [vmem:[%s274 + $0x1a0] sm:$0xff]
      %v335 = vld [vmem:[%s274 + $0x1a8] sm:$0xff]
      %v336 = vld [vmem:[%s274 + $0x1b0] sm:$0xff]
      %v337 = vld [vmem:[%s274 + $0x1b8] sm:$0xff]
      %v338 = vld [vmem:[%s274 + $0x1c0] sm:$0xff]
      %v339 = vld [vmem:[%s274 + $0x1c8] sm:$0xff]
      %v340 = vld [vmem:[%s274 + $0x1d0] sm:$0xff]
      %v341 = vld [vmem:[%s274 + $0x1d8] sm:$0xff]
      %v342 = vld [vmem:[%s274 + $0x1e0] sm:$0xff]
      %v343 = vld [vmem:[%s274 + $0x1e8] sm:$0xff]
      %v344 = vld [vmem:[%s274 + $0x1f0] sm:$0xff]
      %v345 = vld [vmem:[%s274 + $0x1f8] sm:$0xff]
      %v346 = vld [vmem:[%s1] sm:$0x1]
      %v347 = vld [vmem:[%s2] sm:$0x1]
      %v348 = vld [vmem:[%s4] sm:$0x1]
      %v349 = vld [vmem:[%s6] sm:$0x1]
      %vm350 = vcmask 261120
      %v351 = vsel %vm350, %v282, 0.0
      %352 = vadd.xlane.f32.xlu0 %v351
      %v353 = vpop.xlane.xlu0 %352
      %v354 = vsel %vm350, %v283, 0.0
      %355 = vadd.xlane.f32.xlu0 %v354
      %v356 = vpop.xlane.xlu0 %355
      %v357 = vsel %vm350, %v284, 0.0
      %358 = vadd.xlane.f32.xlu0 %v357
      %v359 = vpop.xlane.xlu0 %358
      %v360 = vsel %vm350, %v285, 0.0
      %361 = vadd.xlane.f32.xlu0 %v360
      %v362 = vpop.xlane.xlu0 %361
      %v363 = vsel %vm350, %v286, 0.0
      %364 = vadd.xlane.f32.xlu0 %v363
      %v365 = vpop.xlane.xlu0 %364
      %v366 = vsel %vm350, %v287, 0.0
      %367 = vadd.xlane.f32.xlu0 %v366
      %v368 = vpop.xlane.xlu0 %367
      %v369 = vsel %vm350, %v288, 0.0
      %370 = vadd.xlane.f32.xlu0 %v369
      %v371 = vpop.xlane.xlu0 %370
      %v372 = vsel %vm350, %v289, 0.0
      %373 = vadd.xlane.f32.xlu0 %v372
      %v374 = vpop.xlane.xlu0 %373
      %v375 = vsel %vm350, %v290, 0.0
      %376 = vadd.xlane.f32.xlu0 %v375
      %v377 = vpop.xlane.xlu0 %376
      %v378 = vsel %vm350, %v291, 0.0
      %379 = vadd.xlane.f32.xlu0 %v378
      %v380 = vpop.xlane.xlu0 %379
      %v381 = vsel %vm350, %v292, 0.0
      %382 = vadd.xlane.f32.xlu0 %v381
      %v383 = vpop.xlane.xlu0 %382
      %v384 = vsel %vm350, %v293, 0.0
      %385 = vadd.xlane.f32.xlu0 %v384
      %v386 = vpop.xlane.xlu0 %385
      %v387 = vsel %vm350, %v294, 0.0
      %388 = vadd.xlane.f32.xlu0 %v387
      %v389 = vpop.xlane.xlu0 %388
      %v390 = vsel %vm350, %v295, 0.0
      %391 = vadd.xlane.f32.xlu0 %v390
      %v392 = vpop.xlane.xlu0 %391
      %v393 = vsel %vm350, %v296, 0.0
      %394 = vadd.xlane.f32.xlu0 %v393
      %v395 = vpop.xlane.xlu0 %394
      %v396 = vsel %vm350, %v297, 0.0
      %397 = vadd.xlane.f32.xlu0 %v396
      %v398 = vpop.xlane.xlu0 %397
      %v399 = vsel %vm350, %v298, 0.0
      %400 = vadd.xlane.f32.xlu0 %v399
      %v401 = vpop.xlane.xlu0 %400
      %v402 = vsel %vm350, %v299, 0.0
      %403 = vadd.xlane.f32.xlu0 %v402
      %v404 = vpop.xlane.xlu0 %403
      %v405 = vsel %vm350, %v300, 0.0
      %406 = vadd.xlane.f32.xlu0 %v405
      %v407 = vpop.xlane.xlu0 %406
      %v408 = vsel %vm350, %v301, 0.0
      %409 = vadd.xlane.f32.xlu0 %v408
      %v410 = vpop.xlane.xlu0 %409
      %v411 = vsel %vm350, %v302, 0.0
      %412 = vadd.xlane.f32.xlu0 %v411
      %v413 = vpop.xlane.xlu0 %412
      %v414 = vsel %vm350, %v303, 0.0
      %415 = vadd.xlane.f32.xlu0 %v414
      %v416 = vpop.xlane.xlu0 %415
      %v417 = vsel %vm350, %v304, 0.0
      %418 = vadd.xlane.f32.xlu0 %v417
      %v419 = vpop.xlane.xlu0 %418
      %v420 = vsel %vm350, %v305, 0.0
      %421 = vadd.xlane.f32.xlu0 %v420
      %v422 = vpop.xlane.xlu0 %421
      %v423 = vsel %vm350, %v306, 0.0
      %424 = vadd.xlane.f32.xlu0 %v423
      %v425 = vpop.xlane.xlu0 %424
      %v426 = vsel %vm350, %v307, 0.0
      %427 = vadd.xlane.f32.xlu0 %v426
      %v428 = vpop.xlane.xlu0 %427
      %v429 = vsel %vm350, %v308, 0.0
      %430 = vadd.xlane.f32.xlu0 %v429
      %v431 = vpop.xlane.xlu0 %430
      %v432 = vsel %vm350, %v309, 0.0
      %433 = vadd.xlane.f32.xlu0 %v432
      %v434 = vpop.xlane.xlu0 %433
      %v435 = vsel %vm350, %v310, 0.0
      %436 = vadd.xlane.f32.xlu0 %v435
      %v437 = vpop.xlane.xlu0 %436
      %v438 = vsel %vm350, %v311, 0.0
      %439 = vadd.xlane.f32.xlu0 %v438
      %v440 = vpop.xlane.xlu0 %439
      %v441 = vsel %vm350, %v312, 0.0
      %442 = vadd.xlane.f32.xlu0 %v441
      %v443 = vpop.xlane.xlu0 %442
      %v444 = vsel %vm350, %v313, 0.0
      %445 = vadd.xlane.f32.xlu0 %v444
      %v446 = vpop.xlane.xlu0 %445
      %v447 = vsel %vm350, %v314, 0.0
      %448 = vadd.xlane.f32.xlu0 %v447
      %v449 = vpop.xlane.xlu0 %448
      %v450 = vsel %vm350, %v315, 0.0
      %451 = vadd.xlane.f32.xlu0 %v450
      %v452 = vpop.xlane.xlu0 %451
      %v453 = vsel %vm350, %v316, 0.0
      %454 = vadd.xlane.f32.xlu0 %v453
      %v455 = vpop.xlane.xlu0 %454
      %v456 = vsel %vm350, %v317, 0.0
      %457 = vadd.xlane.f32.xlu0 %v456
      %v458 = vpop.xlane.xlu0 %457
      %v459 = vsel %vm350, %v318, 0.0
      %460 = vadd.xlane.f32.xlu0 %v459
      %v461 = vpop.xlane.xlu0 %460
      %v462 = vsel %vm350, %v319, 0.0
      %463 = vadd.xlane.f32.xlu0 %v462
      %v464 = vpop.xlane.xlu0 %463
      %v465 = vsel %vm350, %v320, 0.0
      %466 = vadd.xlane.f32.xlu0 %v465
      %v467 = vpop.xlane.xlu0 %466
      %v468 = vsel %vm350, %v321, 0.0
      %469 = vadd.xlane.f32.xlu0 %v468
      %v470 = vpop.xlane.xlu0 %469
      %v471 = vsel %vm350, %v322, 0.0
      %472 = vadd.xlane.f32.xlu0 %v471
      %v473 = vpop.xlane.xlu0 %472
      %v474 = vsel %vm350, %v323, 0.0
      %475 = vadd.xlane.f32.xlu0 %v474
      %v476 = vpop.xlane.xlu0 %475
      %v477 = vsel %vm350, %v324, 0.0
      %478 = vadd.xlane.f32.xlu0 %v477
      %v479 = vpop.xlane.xlu0 %478
      %v480 = vsel %vm350, %v325, 0.0
      %481 = vadd.xlane.f32.xlu0 %v480
      %v482 = vpop.xlane.xlu0 %481
      %v483 = vsel %vm350, %v326, 0.0
      %484 = vadd.xlane.f32.xlu0 %v483
      %v485 = vpop.xlane.xlu0 %484
      %v486 = vsel %vm350, %v327, 0.0
      %487 = vadd.xlane.f32.xlu0 %v486
      %v488 = vpop.xlane.xlu0 %487
      %v489 = vsel %vm350, %v328, 0.0
      %490 = vadd.xlane.f32.xlu0 %v489
      %v491 = vpop.xlane.xlu0 %490
      %v492 = vsel %vm350, %v329, 0.0
      %493 = vadd.xlane.f32.xlu0 %v492
      %v494 = vpop.xlane.xlu0 %493
      %v495 = vsel %vm350, %v330, 0.0
      %496 = vadd.xlane.f32.xlu0 %v495
      %v497 = vpop.xlane.xlu0 %496
      %v498 = vsel %vm350, %v331, 0.0
      %499 = vadd.xlane.f32.xlu0 %v498
      %v500 = vpop.xlane.xlu0 %499
      %v501 = vsel %vm350, %v332, 0.0
      %502 = vadd.xlane.f32.xlu0 %v501
      %v503 = vpop.xlane.xlu0 %502
      %v504 = vsel %vm350, %v333, 0.0
      %505 = vadd.xlane.f32.xlu0 %v504
      %v506 = vpop.xlane.xlu0 %505
      %v507 = vsel %vm350, %v334, 0.0
      %508 = vadd.xlane.f32.xlu0 %v507
      %v509 = vpop.xlane.xlu0 %508
      %v510 = vsel %vm350, %v335, 0.0
      %511 = vadd.xlane.f32.xlu0 %v510
      %v512 = vpop.xlane.xlu0 %511
      %v513 = vsel %vm350, %v336, 0.0
      %514 = vadd.xlane.f32.xlu0 %v513
      %v515 = vpop.xlane.xlu0 %514
      %v516 = vsel %vm350, %v337, 0.0
      %517 = vadd.xlane.f32.xlu0 %v516
      %v518 = vpop.xlane.xlu0 %517
      %v519 = vsel %vm350, %v338, 0.0
      %520 = vadd.xlane.f32.xlu0 %v519
      %v521 = vpop.xlane.xlu0 %520
      %v522 = vsel %vm350, %v339, 0.0
      %523 = vadd.xlane.f32.xlu0 %v522
      %v524 = vpop.xlane.xlu0 %523
      %v525 = vsel %vm350, %v340, 0.0
      %526 = vadd.xlane.f32.xlu0 %v525
      %v527 = vpop.xlane.xlu0 %526
      %v528 = vsel %vm350, %v341, 0.0
      %529 = vadd.xlane.f32.xlu0 %v528
      %v530 = vpop.xlane.xlu0 %529
      %v531 = vsel %vm350, %v342, 0.0
      %532 = vadd.xlane.f32.xlu0 %v531
      %v533 = vpop.xlane.xlu0 %532
      %v534 = vsel %vm350, %v343, 0.0
      %535 = vadd.xlane.f32.xlu0 %v534
      %v536 = vpop.xlane.xlu0 %535
      %v537 = vsel %vm350, %v344, 0.0
      %538 = vadd.xlane.f32.xlu0 %v537
      %v539 = vpop.xlane.xlu0 %538
      %v540 = vsel %vm350, %v345, 0.0
      %541 = vadd.xlane.f32.xlu0 %v540
      %v542 = vpop.xlane.xlu0 %541
      %v543 = vrcp.pop 32.0
      %v544 = vmul.f32 %v353, %v543
      %v545 = vmul.f32 %v356, %v543
      %v546 = vmul.f32 %v359, %v543
      %v547 = vmul.f32 %v362, %v543
      %v548 = vmul.f32 %v365, %v543
      %v549 = vmul.f32 %v368, %v543
      %v550 = vmul.f32 %v371, %v543
      %v551 = vmul.f32 %v374, %v543
      %v552 = vmul.f32 %v377, %v543
      %v553 = vmul.f32 %v380, %v543
      %v554 = vmul.f32 %v383, %v543
      %v555 = vmul.f32 %v386, %v543
      %v556 = vmul.f32 %v389, %v543
      %v557 = vmul.f32 %v392, %v543
      %v558 = vmul.f32 %v395, %v543
      %v559 = vmul.f32 %v398, %v543
      %v560 = vmul.f32 %v401, %v543
      %v561 = vmul.f32 %v404, %v543
      %v562 = vmul.f32 %v407, %v543
      %v563 = vmul.f32 %v410, %v543
      %v564 = vmul.f32 %v413, %v543
      %v565 = vmul.f32 %v416, %v543
      %v566 = vmul.f32 %v419, %v543
      %v567 = vmul.f32 %v422, %v543
      %v568 = vmul.f32 %v425, %v543
      %v569 = vmul.f32 %v428, %v543
      %v570 = vmul.f32 %v431, %v543
      %v571 = vmul.f32 %v434, %v543
      %v572 = vmul.f32 %v437, %v543
      %v573 = vmul.f32 %v440, %v543
      %v574 = vmul.f32 %v443, %v543
      %v575 = vmul.f32 %v446, %v543
      %v576 = vmul.f32 %v449, %v543
      %v577 = vmul.f32 %v452, %v543
      %v578 = vmul.f32 %v455, %v543
      %v579 = vmul.f32 %v458, %v543
      %v580 = vmul.f32 %v461, %v543
      %v581 = vmul.f32 %v464, %v543
      %v582 = vmul.f32 %v467, %v543
      %v583 = vmul.f32 %v470, %v543
      %v584 = vmul.f32 %v473, %v543
      %v585 = vmul.f32 %v476, %v543
      %v586 = vmul.f32 %v479, %v543
      %v587 = vmul.f32 %v482, %v543
      %v588 = vmul.f32 %v485, %v543
      %v589 = vmul.f32 %v488, %v543
      %v590 = vmul.f32 %v491, %v543
      %v591 = vmul.f32 %v494, %v543
      %v592 = vmul.f32 %v497, %v543
      %v593 = vmul.f32 %v500, %v543
      %v594 = vmul.f32 %v503, %v543
      %v595 = vmul.f32 %v506, %v543
      %v596 = vmul.f32 %v509, %v543
      %v597 = vmul.f32 %v512, %v543
      %v598 = vmul.f32 %v515, %v543
      %v599 = vmul.f32 %v518, %v543
      %v600 = vmul.f32 %v521, %v543
      %v601 = vmul.f32 %v524, %v543
      %v602 = vmul.f32 %v527, %v543
      %v603 = vmul.f32 %v530, %v543
      %v604 = vmul.f32 %v533, %v543
      %v605 = vmul.f32 %v536, %v543
      %v606 = vmul.f32 %v539, %v543
      %v607 = vmul.f32 %v542, %v543
      %v608 = vsub.f32 %v282, %v544
      %v609 = vsub.f32 %v283, %v545
      %v610 = vsub.f32 %v284, %v546
      %v611 = vsub.f32 %v285, %v547
      %v612 = vsub.f32 %v286, %v548
      %v613 = vsub.f32 %v287, %v549
      %v614 = vsub.f32 %v288, %v550
      %v615 = vsub.f32 %v289, %v551
      %v616 = vsub.f32 %v290, %v552
      %v617 = vsub.f32 %v291, %v553
      %v618 = vsub.f32 %v292, %v554
      %v619 = vsub.f32 %v293, %v555
      %v620 = vsub.f32 %v294, %v556
      %v621 = vsub.f32 %v295, %v557
      %v622 = vsub.f32 %v296, %v558
      %v623 = vsub.f32 %v297, %v559
      %v624 = vsub.f32 %v298, %v560
      %v625 = vsub.f32 %v299, %v561
      %v626 = vsub.f32 %v300, %v562
      %v627 = vsub.f32 %v301, %v563
      %v628 = vsub.f32 %v302, %v564
      %v629 = vsub.f32 %v303, %v565
      %v630 = vsub.f32 %v304, %v566
      %v631 = vsub.f32 %v305, %v567
      %v632 = vsub.f32 %v306, %v568
      %v633 = vsub.f32 %v307, %v569
      %v634 = vsub.f32 %v308, %v570
      %v635 = vsub.f32 %v309, %v571
      %v636 = vsub.f32 %v310, %v572
      %v637 = vsub.f32 %v311, %v573
      %v638 = vsub.f32 %v312, %v574
      %v639 = vsub.f32 %v313, %v575
      %v640 = vsub.f32 %v314, %v576
      %v641 = vsub.f32 %v315, %v577
      %v642 = vsub.f32 %v316, %v578
      %v643 = vsub.f32 %v317, %v579
      %v644 = vsub.f32 %v318, %v580
      %v645 = vsub.f32 %v319, %v581
      %v646 = vsub.f32 %v320, %v582
      %v647 = vsub.f32 %v321, %v583
      %v648 = vsub.f32 %v322, %v584
      %v649 = vsub.f32 %v323, %v585
      %v650 = vsub.f32 %v324, %v586
      %v651 = vsub.f32 %v325, %v587
      %v652 = vsub.f32 %v326, %v588
      %v653 = vsub.f32 %v327, %v589
      %v654 = vsub.f32 %v328, %v590
      %v655 = vsub.f32 %v329, %v591
      %v656 = vsub.f32 %v330, %v592
      %v657 = vsub.f32 %v331, %v593
      %v658 = vsub.f32 %v332, %v594
      %v659 = vsub.f32 %v333, %v595
      %v660 = vsub.f32 %v334, %v596
      %v661 = vsub.f32 %v335, %v597
      %v662 = vsub.f32 %v336, %v598
      %v663 = vsub.f32 %v337, %v599
      %v664 = vsub.f32 %v338, %v600
      %v665 = vsub.f32 %v339, %v601
      %v666 = vsub.f32 %v340, %v602
      %v667 = vsub.f32 %v341, %v603
      %v668 = vsub.f32 %v342, %v604
      %v669 = vsub.f32 %v343, %v605
      %v670 = vsub.f32 %v344, %v606
      %v671 = vsub.f32 %v345, %v607
      %v672 = vmul.f32 %v608, %v608
      %v673 = vmul.f32 %v609, %v609
      %v674 = vmul.f32 %v610, %v610
      %v675 = vmul.f32 %v611, %v611
      %v676 = vmul.f32 %v612, %v612
      %v677 = vmul.f32 %v613, %v613
      %v678 = vmul.f32 %v614, %v614
      %v679 = vmul.f32 %v615, %v615
      %v680 = vmul.f32 %v616, %v616
      %v681 = vmul.f32 %v617, %v617
      %v682 = vmul.f32 %v618, %v618
      %v683 = vmul.f32 %v619, %v619
      %v684 = vmul.f32 %v620, %v620
      %v685 = vmul.f32 %v621, %v621
      %v686 = vmul.f32 %v622, %v622
      %v687 = vmul.f32 %v623, %v623
      %v688 = vmul.f32 %v624, %v624
      %v689 = vmul.f32 %v625, %v625
      %v690 = vmul.f32 %v626, %v626
      %v691 = vmul.f32 %v627, %v627
      %v692 = vmul.f32 %v628, %v628
      %v693 = vmul.f32 %v629, %v629
      %v694 = vmul.f32 %v630, %v630
      %v695 = vmul.f32 %v631, %v631
      %v696 = vmul.f32 %v632, %v632
      %v697 = vmul.f32 %v633, %v633
      %v698 = vmul.f32 %v634, %v634
      %v699 = vmul.f32 %v635, %v635
      %v700 = vmul.f32 %v636, %v636
      %v701 = vmul.f32 %v637, %v637
      %v702 = vmul.f32 %v638, %v638
      %v703 = vmul.f32 %v639, %v639
      %v704 = vmul.f32 %v640, %v640
      %v705 = vmul.f32 %v641, %v641
      %v706 = vmul.f32 %v642, %v642
      %v707 = vmul.f32 %v643, %v643
      %v708 = vmul.f32 %v644, %v644
      %v709 = vmul.f32 %v645, %v645
      %v710 = vmul.f32 %v646, %v646
      %v711 = vmul.f32 %v647, %v647
      %v712 = vmul.f32 %v648, %v648
      %v713 = vmul.f32 %v649, %v649
      %v714 = vmul.f32 %v650, %v650
      %v715 = vmul.f32 %v651, %v651
      %v716 = vmul.f32 %v652, %v652
      %v717 = vmul.f32 %v653, %v653
      %v718 = vmul.f32 %v654, %v654
      %v719 = vmul.f32 %v655, %v655
      %v720 = vmul.f32 %v656, %v656
      %v721 = vmul.f32 %v657, %v657
      %v722 = vmul.f32 %v658, %v658
      %v723 = vmul.f32 %v659, %v659
      %v724 = vmul.f32 %v660, %v660
      %v725 = vmul.f32 %v661, %v661
      %v726 = vmul.f32 %v662, %v662
      %v727 = vmul.f32 %v663, %v663
      %v728 = vmul.f32 %v664, %v664
      %v729 = vmul.f32 %v665, %v665
      %v730 = vmul.f32 %v666, %v666
      %v731 = vmul.f32 %v667, %v667
      %v732 = vmul.f32 %v668, %v668
      %v733 = vmul.f32 %v669, %v669
      %v734 = vmul.f32 %v670, %v670
      %v735 = vmul.f32 %v671, %v671
      %v736 = vsel %vm350, %v672, 0.0
      %737 = vadd.xlane.f32.xlu0 %v736
      %v738 = vpop.xlane.xlu0 %737
      %v739 = vsel %vm350, %v673, 0.0
      %740 = vadd.xlane.f32.xlu0 %v739
      %v741 = vpop.xlane.xlu0 %740
      %v742 = vsel %vm350, %v674, 0.0
      %743 = vadd.xlane.f32.xlu0 %v742
      %v744 = vpop.xlane.xlu0 %743
      %v745 = vsel %vm350, %v675, 0.0
      %746 = vadd.xlane.f32.xlu0 %v745
      %v747 = vpop.xlane.xlu0 %746
      %v748 = vsel %vm350, %v676, 0.0
      %749 = vadd.xlane.f32.xlu0 %v748
      %v750 = vpop.xlane.xlu0 %749
      %v751 = vsel %vm350, %v677, 0.0
      %752 = vadd.xlane.f32.xlu0 %v751
      %v753 = vpop.xlane.xlu0 %752
      %v754 = vsel %vm350, %v678, 0.0
      %755 = vadd.xlane.f32.xlu0 %v754
      %v756 = vpop.xlane.xlu0 %755
      %v757 = vsel %vm350, %v679, 0.0
      %758 = vadd.xlane.f32.xlu0 %v757
      %v759 = vpop.xlane.xlu0 %758
      %v760 = vsel %vm350, %v680, 0.0
      %761 = vadd.xlane.f32.xlu0 %v760
      %v762 = vpop.xlane.xlu0 %761
      %v763 = vsel %vm350, %v681, 0.0
      %764 = vadd.xlane.f32.xlu0 %v763
      %v765 = vpop.xlane.xlu0 %764
      %v766 = vsel %vm350, %v682, 0.0
      %767 = vadd.xlane.f32.xlu0 %v766
      %v768 = vpop.xlane.xlu0 %767
      %v769 = vsel %vm350, %v683, 0.0
      %770 = vadd.xlane.f32.xlu0 %v769
      %v771 = vpop.xlane.xlu0 %770
      %v772 = vsel %vm350, %v684, 0.0
      %773 = vadd.xlane.f32.xlu0 %v772
      %v774 = vpop.xlane.xlu0 %773
      %v775 = vsel %vm350, %v685, 0.0
      %776 = vadd.xlane.f32.xlu0 %v775
      %v777 = vpop.xlane.xlu0 %776
      %v778 = vsel %vm350, %v686, 0.0
      %779 = vadd.xlane.f32.xlu0 %v778
      %v780 = vpop.xlane.xlu0 %779
      %v781 = vsel %vm350, %v687, 0.0
      %782 = vadd.xlane.f32.xlu0 %v781
      %v783 = vpop.xlane.xlu0 %782
      %v784 = vsel %vm350, %v688, 0.0
      %785 = vadd.xlane.f32.xlu0 %v784
      %v786 = vpop.xlane.xlu0 %785
      %v787 = vsel %vm350, %v689, 0.0
      %788 = vadd.xlane.f32.xlu0 %v787
      %v789 = vpop.xlane.xlu0 %788
      %v790 = vsel %vm350, %v690, 0.0
      %791 = vadd.xlane.f32.xlu0 %v790
      %v792 = vpop.xlane.xlu0 %791
      %v793 = vsel %vm350, %v691, 0.0
      %794 = vadd.xlane.f32.xlu0 %v793
      %v795 = vpop.xlane.xlu0 %794
      %v796 = vsel %vm350, %v692, 0.0
      %797 = vadd.xlane.f32.xlu0 %v796
      %v798 = vpop.xlane.xlu0 %797
      %v799 = vsel %vm350, %v693, 0.0
      %800 = vadd.xlane.f32.xlu0 %v799
      %v801 = vpop.xlane.xlu0 %800
      %v802 = vsel %vm350, %v694, 0.0
      %803 = vadd.xlane.f32.xlu0 %v802
      %v804 = vpop.xlane.xlu0 %803
      %v805 = vsel %vm350, %v695, 0.0
      %806 = vadd.xlane.f32.xlu0 %v805
      %v807 = vpop.xlane.xlu0 %806
      %v808 = vsel %vm350, %v696, 0.0
      %809 = vadd.xlane.f32.xlu0 %v808
      %v810 = vpop.xlane.xlu0 %809
      %v811 = vsel %vm350, %v697, 0.0
      %812 = vadd.xlane.f32.xlu0 %v811
      %v813 = vpop.xlane.xlu0 %812
      %v814 = vsel %vm350, %v698, 0.0
      %815 = vadd.xlane.f32.xlu0 %v814
      %v816 = vpop.xlane.xlu0 %815
      %v817 = vsel %vm350, %v699, 0.0
      %818 = vadd.xlane.f32.xlu0 %v817
      %v819 = vpop.xlane.xlu0 %818
      %v820 = vsel %vm350, %v700, 0.0
      %821 = vadd.xlane.f32.xlu0 %v820
      %v822 = vpop.xlane.xlu0 %821
      %v823 = vsel %vm350, %v701, 0.0
      %824 = vadd.xlane.f32.xlu0 %v823
      %v825 = vpop.xlane.xlu0 %824
      %v826 = vsel %vm350, %v702, 0.0
      %827 = vadd.xlane.f32.xlu0 %v826
      %v828 = vpop.xlane.xlu0 %827
      %v829 = vsel %vm350, %v703, 0.0
      %830 = vadd.xlane.f32.xlu0 %v829
      %v831 = vpop.xlane.xlu0 %830
      %v832 = vsel %vm350, %v704, 0.0
      %833 = vadd.xlane.f32.xlu0 %v832
      %v834 = vpop.xlane.xlu0 %833
      %v835 = vsel %vm350, %v705, 0.0
      %836 = vadd.xlane.f32.xlu0 %v835
      %v837 = vpop.xlane.xlu0 %836
      %v838 = vsel %vm350, %v706, 0.0
      %839 = vadd.xlane.f32.xlu0 %v838
      %v840 = vpop.xlane.xlu0 %839
      %v841 = vsel %vm350, %v707, 0.0
      %842 = vadd.xlane.f32.xlu0 %v841
      %v843 = vpop.xlane.xlu0 %842
      %v844 = vsel %vm350, %v708, 0.0
      %845 = vadd.xlane.f32.xlu0 %v844
      %v846 = vpop.xlane.xlu0 %845
      %v847 = vsel %vm350, %v709, 0.0
      %848 = vadd.xlane.f32.xlu0 %v847
      %v849 = vpop.xlane.xlu0 %848
      %v850 = vsel %vm350, %v710, 0.0
      %851 = vadd.xlane.f32.xlu0 %v850
      %v852 = vpop.xlane.xlu0 %851
      %v853 = vsel %vm350, %v711, 0.0
      %854 = vadd.xlane.f32.xlu0 %v853
      %v855 = vpop.xlane.xlu0 %854
      %v856 = vsel %vm350, %v712, 0.0
      %857 = vadd.xlane.f32.xlu0 %v856
      %v858 = vpop.xlane.xlu0 %857
      %v859 = vsel %vm350, %v713, 0.0
      %860 = vadd.xlane.f32.xlu0 %v859
      %v861 = vpop.xlane.xlu0 %860
      %v862 = vsel %vm350, %v714, 0.0
      %863 = vadd.xlane.f32.xlu0 %v862
      %v864 = vpop.xlane.xlu0 %863
      %v865 = vsel %vm350, %v715, 0.0
      %866 = vadd.xlane.f32.xlu0 %v865
      %v867 = vpop.xlane.xlu0 %866
      %v868 = vsel %vm350, %v716, 0.0
      %869 = vadd.xlane.f32.xlu0 %v868
      %v870 = vpop.xlane.xlu0 %869
      %v871 = vsel %vm350, %v717, 0.0
      %872 = vadd.xlane.f32.xlu0 %v871
      %v873 = vpop.xlane.xlu0 %872
      %v874 = vsel %vm350, %v718, 0.0
      %875 = vadd.xlane.f32.xlu0 %v874
      %v876 = vpop.xlane.xlu0 %875
      %v877 = vsel %vm350, %v719, 0.0
      %878 = vadd.xlane.f32.xlu0 %v877
      %v879 = vpop.xlane.xlu0 %878
      %v880 = vsel %vm350, %v720, 0.0
      %881 = vadd.xlane.f32.xlu0 %v880
      %v882 = vpop.xlane.xlu0 %881
      %v883 = vsel %vm350, %v721, 0.0
      %884 = vadd.xlane.f32.xlu0 %v883
      %v885 = vpop.xlane.xlu0 %884
      %v886 = vsel %vm350, %v722, 0.0
      %887 = vadd.xlane.f32.xlu0 %v886
      %v888 = vpop.xlane.xlu0 %887
      %v889 = vsel %vm350, %v723, 0.0
      %890 = vadd.xlane.f32.xlu0 %v889
      %v891 = vpop.xlane.xlu0 %890
      %v892 = vsel %vm350, %v724, 0.0
      %893 = vadd.xlane.f32.xlu0 %v892
      %v894 = vpop.xlane.xlu0 %893
      %v895 = vsel %vm350, %v725, 0.0
      %896 = vadd.xlane.f32.xlu0 %v895
      %v897 = vpop.xlane.xlu0 %896
      %v898 = vsel %vm350, %v726, 0.0
      %899 = vadd.xlane.f32.xlu0 %v898
      %v900 = vpop.xlane.xlu0 %899
      %v901 = vsel %vm350, %v727, 0.0
      %902 = vadd.xlane.f32.xlu0 %v901
      %v903 = vpop.xlane.xlu0 %902
      %v904 = vsel %vm350, %v728, 0.0
      %905 = vadd.xlane.f32.xlu0 %v904
      %v906 = vpop.xlane.xlu0 %905
      %v907 = vsel %vm350, %v729, 0.0
      %908 = vadd.xlane.f32.xlu0 %v907
      %v909 = vpop.xlane.xlu0 %908
      %v910 = vsel %vm350, %v730, 0.0
      %911 = vadd.xlane.f32.xlu0 %v910
      %v912 = vpop.xlane.xlu0 %911
      %v913 = vsel %vm350, %v731, 0.0
      %914 = vadd.xlane.f32.xlu0 %v913
      %v915 = vpop.xlane.xlu0 %914
      %v916 = vsel %vm350, %v732, 0.0
      %917 = vadd.xlane.f32.xlu0 %v916
      %v918 = vpop.xlane.xlu0 %917
      %v919 = vsel %vm350, %v733, 0.0
      %920 = vadd.xlane.f32.xlu0 %v919
      %v921 = vpop.xlane.xlu0 %920
      %v922 = vsel %vm350, %v734, 0.0
      %923 = vadd.xlane.f32.xlu0 %v922
      %v924 = vpop.xlane.xlu0 %923
      %v925 = vsel %vm350, %v735, 0.0
      %926 = vadd.xlane.f32.xlu0 %v925
      %v927 = vpop.xlane.xlu0 %926
      %v928 = vmul.f32 %v738, %v543
      %v929 = vmul.f32 %v741, %v543
      %v930 = vmul.f32 %v744, %v543
      %v931 = vmul.f32 %v747, %v543
      %v932 = vmul.f32 %v750, %v543
      %v933 = vmul.f32 %v753, %v543
      %v934 = vmul.f32 %v756, %v543
      %v935 = vmul.f32 %v759, %v543
      %v936 = vmul.f32 %v762, %v543
      %v937 = vmul.f32 %v765, %v543
      %v938 = vmul.f32 %v768, %v543
      %v939 = vmul.f32 %v771, %v543
      %v940 = vmul.f32 %v774, %v543
      %v941 = vmul.f32 %v777, %v543
      %v942 = vmul.f32 %v780, %v543
      %v943 = vmul.f32 %v783, %v543
      %v944 = vmul.f32 %v786, %v543
      %v945 = vmul.f32 %v789, %v543
      %v946 = vmul.f32 %v792, %v543
      %v947 = vmul.f32 %v795, %v543
      %v948 = vmul.f32 %v798, %v543
      %v949 = vmul.f32 %v801, %v543
      %v950 = vmul.f32 %v804, %v543
      %v951 = vmul.f32 %v807, %v543
      %v952 = vmul.f32 %v810, %v543
      %v953 = vmul.f32 %v813, %v543
      %v954 = vmul.f32 %v816, %v543
      %v955 = vmul.f32 %v819, %v543
      %v956 = vmul.f32 %v822, %v543
      %v957 = vmul.f32 %v825, %v543
      %v958 = vmul.f32 %v828, %v543
      %v959 = vmul.f32 %v831, %v543
      %v960 = vmul.f32 %v834, %v543
      %v961 = vmul.f32 %v837, %v543
      %v962 = vmul.f32 %v840, %v543
      %v963 = vmul.f32 %v843, %v543
      %v964 = vmul.f32 %v846, %v543
      %v965 = vmul.f32 %v849, %v543
      %v966 = vmul.f32 %v852, %v543
      %v967 = vmul.f32 %v855, %v543
      %v968 = vmul.f32 %v858, %v543
      %v969 = vmul.f32 %v861, %v543
      %v970 = vmul.f32 %v864, %v543
      %v971 = vmul.f32 %v867, %v543
      %v972 = vmul.f32 %v870, %v543
      %v973 = vmul.f32 %v873, %v543
      %v974 = vmul.f32 %v876, %v543
      %v975 = vmul.f32 %v879, %v543
      %v976 = vmul.f32 %v882, %v543
      %v977 = vmul.f32 %v885, %v543
      %v978 = vmul.f32 %v888, %v543
      %v979 = vmul.f32 %v891, %v543
      %v980 = vmul.f32 %v894, %v543
      %v981 = vmul.f32 %v897, %v543
      %v982 = vmul.f32 %v900, %v543
      %v983 = vmul.f32 %v903, %v543
      %v984 = vmul.f32 %v906, %v543
      %v985 = vmul.f32 %v909, %v543
      %v986 = vmul.f32 %v912, %v543
      %v987 = vmul.f32 %v915, %v543
      %v988 = vmul.f32 %v918, %v543
      %v989 = vmul.f32 %v921, %v543
      %v990 = vmul.f32 %v924, %v543
      %v991 = vmul.f32 %v927, %v543
      %v992 = vadd.f32 %v928, 1e-05
      %v993 = vadd.f32 %v929, 1e-05
      %v994 = vadd.f32 %v930, 1e-05
      %v995 = vadd.f32 %v931, 1e-05
      %v996 = vadd.f32 %v932, 1e-05
      %v997 = vadd.f32 %v933, 1e-05
      %v998 = vadd.f32 %v934, 1e-05
      %v999 = vadd.f32 %v935, 1e-05
      %v1000 = vadd.f32 %v936, 1e-05
      %v1001 = vadd.f32 %v937, 1e-05
      %v1002 = vadd.f32 %v938, 1e-05
      %v1003 = vadd.f32 %v939, 1e-05
      %v1004 = vadd.f32 %v940, 1e-05
      %v1005 = vadd.f32 %v941, 1e-05
      %v1006 = vadd.f32 %v942, 1e-05
      %v1007 = vadd.f32 %v943, 1e-05
      %v1008 = vadd.f32 %v944, 1e-05
      %v1009 = vadd.f32 %v945, 1e-05
      %v1010 = vadd.f32 %v946, 1e-05
      %v1011 = vadd.f32 %v947, 1e-05
      %v1012 = vadd.f32 %v948, 1e-05
      %v1013 = vadd.f32 %v949, 1e-05
      %v1014 = vadd.f32 %v950, 1e-05
      %v1015 = vadd.f32 %v951, 1e-05
      %v1016 = vadd.f32 %v952, 1e-05
      %v1017 = vadd.f32 %v953, 1e-05
      %v1018 = vadd.f32 %v954, 1e-05
      %v1019 = vadd.f32 %v955, 1e-05
      %v1020 = vadd.f32 %v956, 1e-05
      %v1021 = vadd.f32 %v957, 1e-05
      %v1022 = vadd.f32 %v958, 1e-05
      %v1023 = vadd.f32 %v959, 1e-05
      %v1024 = vadd.f32 %v960, 1e-05
      %v1025 = vadd.f32 %v961, 1e-05
      %v1026 = vadd.f32 %v962, 1e-05
      %v1027 = vadd.f32 %v963, 1e-05
      %v1028 = vadd.f32 %v964, 1e-05
      %v1029 = vadd.f32 %v965, 1e-05
      %v1030 = vadd.f32 %v966, 1e-05
      %v1031 = vadd.f32 %v967, 1e-05
      %v1032 = vadd.f32 %v968, 1e-05
      %v1033 = vadd.f32 %v969, 1e-05
      %v1034 = vadd.f32 %v970, 1e-05
      %v1035 = vadd.f32 %v971, 1e-05
      %v1036 = vadd.f32 %v972, 1e-05
      %v1037 = vadd.f32 %v973, 1e-05
      %v1038 = vadd.f32 %v974, 1e-05
      %v1039 = vadd.f32 %v975, 1e-05
      %v1040 = vadd.f32 %v976, 1e-05
      %v1041 = vadd.f32 %v977, 1e-05
      %v1042 = vadd.f32 %v978, 1e-05
      %v1043 = vadd.f32 %v979, 1e-05
      %v1044 = vadd.f32 %v980, 1e-05
      %v1045 = vadd.f32 %v981, 1e-05
      %v1046 = vadd.f32 %v982, 1e-05
      %v1047 = vadd.f32 %v983, 1e-05
      %v1048 = vadd.f32 %v984, 1e-05
      %v1049 = vadd.f32 %v985, 1e-05
      %v1050 = vadd.f32 %v986, 1e-05
      %v1051 = vadd.f32 %v987, 1e-05
      %v1052 = vadd.f32 %v988, 1e-05
      %v1053 = vadd.f32 %v989, 1e-05
      %v1054 = vadd.f32 %v990, 1e-05
      %v1055 = vadd.f32 %v991, 1e-05
      %v1056 = vrsqrt.pop %v992
      %v1057 = vrsqrt.pop %v993
      %v1058 = vrsqrt.pop %v994
      %v1059 = vrsqrt.pop %v995
      %v1060 = vrsqrt.pop %v996
      %v1061 = vrsqrt.pop %v997
      %v1062 = vrsqrt.pop %v998
      %v1063 = vrsqrt.pop %v999
      %v1064 = vrsqrt.pop %v1000
      %v1065 = vrsqrt.pop %v1001
      %v1066 = vrsqrt.pop %v1002
      %v1067 = vrsqrt.pop %v1003
      %v1068 = vrsqrt.pop %v1004
      %v1069 = vrsqrt.pop %v1005
      %v1070 = vrsqrt.pop %v1006
      %v1071 = vrsqrt.pop %v1007
      %v1072 = vrsqrt.pop %v1008
      %v1073 = vrsqrt.pop %v1009
      %v1074 = vrsqrt.pop %v1010
      %v1075 = vrsqrt.pop %v1011
      %v1076 = vrsqrt.pop %v1012
      %v1077 = vrsqrt.pop %v1013
      %v1078 = vrsqrt.pop %v1014
      %v1079 = vrsqrt.pop %v1015
      %v1080 = vrsqrt.pop %v1016
      %v1081 = vrsqrt.pop %v1017
      %v1082 = vrsqrt.pop %v1018
      %v1083 = vrsqrt.pop %v1019
      %v1084 = vrsqrt.pop %v1020
      %v1085 = vrsqrt.pop %v1021
      %v1086 = vrsqrt.pop %v1022
      %v1087 = vrsqrt.pop %v1023
      %v1088 = vrsqrt.pop %v1024
      %v1089 = vrsqrt.pop %v1025
      %v1090 = vrsqrt.pop %v1026
      %v1091 = vrsqrt.pop %v1027
      %v1092 = vrsqrt.pop %v1028
      %v1093 = vrsqrt.pop %v1029
      %v1094 = vrsqrt.pop %v1030
      %v1095 = vrsqrt.pop %v1031
      %v1096 = vrsqrt.pop %v1032
      %v1097 = vrsqrt.pop %v1033
      %v1098 = vrsqrt.pop %v1034
      %v1099 = vrsqrt.pop %v1035
      %v1100 = vrsqrt.pop %v1036
      %v1101 = vrsqrt.pop %v1037
      %v1102 = vrsqrt.pop %v1038
      %v1103 = vrsqrt.pop %v1039
      %v1104 = vrsqrt.pop %v1040
      %v1105 = vrsqrt.pop %v1041
      %v1106 = vrsqrt.pop %v1042
      %v1107 = vrsqrt.pop %v1043
      %v1108 = vrsqrt.pop %v1044
      %v1109 = vrsqrt.pop %v1045
      %v1110 = vrsqrt.pop %v1046
      %v1111 = vrsqrt.pop %v1047
      %v1112 = vrsqrt.pop %v1048
      %v1113 = vrsqrt.pop %v1049
      %v1114 = vrsqrt.pop %v1050
      %v1115 = vrsqrt.pop %v1051
      %v1116 = vrsqrt.pop %v1052
      %v1117 = vrsqrt.pop %v1053
      %v1118 = vrsqrt.pop %v1054
      %v1119 = vrsqrt.pop %v1055
      %v1120 = vmul.f32 %v608, %v1056
      %v1121 = vmul.f32 %v609, %v1057
      %v1122 = vmul.f32 %v610, %v1058
      %v1123 = vmul.f32 %v611, %v1059
      %v1124 = vmul.f32 %v612, %v1060
      %v1125 = vmul.f32 %v613, %v1061
      %v1126 = vmul.f32 %v614, %v1062
      %v1127 = vmul.f32 %v615, %v1063
      %v1128 = vmul.f32 %v616, %v1064
      %v1129 = vmul.f32 %v617, %v1065
      %v1130 = vmul.f32 %v618, %v1066
      %v1131 = vmul.f32 %v619, %v1067
      %v1132 = vmul.f32 %v620, %v1068
      %v1133 = vmul.f32 %v621, %v1069
      %v1134 = vmul.f32 %v622, %v1070
      %v1135 = vmul.f32 %v623, %v1071
      %v1136 = vmul.f32 %v624, %v1072
      %v1137 = vmul.f32 %v625, %v1073
      %v1138 = vmul.f32 %v626, %v1074
      %v1139 = vmul.f32 %v627, %v1075
      %v1140 = vmul.f32 %v628, %v1076
      %v1141 = vmul.f32 %v629, %v1077
      %v1142 = vmul.f32 %v630, %v1078
      %v1143 = vmul.f32 %v631, %v1079
      %v1144 = vmul.f32 %v632, %v1080
      %v1145 = vmul.f32 %v633, %v1081
      %v1146 = vmul.f32 %v634, %v1082
      %v1147 = vmul.f32 %v635, %v1083
      %v1148 = vmul.f32 %v636, %v1084
      %v1149 = vmul.f32 %v637, %v1085
      %v1150 = vmul.f32 %v638, %v1086
      %v1151 = vmul.f32 %v639, %v1087
      %v1152 = vmul.f32 %v640, %v1088
      %v1153 = vmul.f32 %v641, %v1089
      %v1154 = vmul.f32 %v642, %v1090
      %v1155 = vmul.f32 %v643, %v1091
      %v1156 = vmul.f32 %v644, %v1092
      %v1157 = vmul.f32 %v645, %v1093
      %v1158 = vmul.f32 %v646, %v1094
      %v1159 = vmul.f32 %v647, %v1095
      %v1160 = vmul.f32 %v648, %v1096
      %v1161 = vmul.f32 %v649, %v1097
      %v1162 = vmul.f32 %v650, %v1098
      %v1163 = vmul.f32 %v651, %v1099
      %v1164 = vmul.f32 %v652, %v1100
      %v1165 = vmul.f32 %v653, %v1101
      %v1166 = vmul.f32 %v654, %v1102
      %v1167 = vmul.f32 %v655, %v1103
      %v1168 = vmul.f32 %v656, %v1104
      %v1169 = vmul.f32 %v657, %v1105
      %v1170 = vmul.f32 %v658, %v1106
      %v1171 = vmul.f32 %v659, %v1107
      %v1172 = vmul.f32 %v660, %v1108
      %v1173 = vmul.f32 %v661, %v1109
      %v1174 = vmul.f32 %v662, %v1110
      %v1175 = vmul.f32 %v663, %v1111
      %v1176 = vmul.f32 %v664, %v1112
      %v1177 = vmul.f32 %v665, %v1113
      %v1178 = vmul.f32 %v666, %v1114
      %v1179 = vmul.f32 %v667, %v1115
      %v1180 = vmul.f32 %v668, %v1116
      %v1181 = vmul.f32 %v669, %v1117
      %v1182 = vmul.f32 %v670, %v1118
      %v1183 = vmul.f32 %v671, %v1119
      %v1185 = vlaneseq
      %v1186 = vshrl.u32 %v1185, 7
      %v1187 = vsub.s32 0, %v1186
      %v1188 = vrot.slane %v346, %v1187
      %v1190 = vmul.f32 %v1120, %v1188
      %v1191 = vmul.f32 %v1121, %v1188
      %v1192 = vmul.f32 %v1122, %v1188
      %v1193 = vmul.f32 %v1123, %v1188
      %v1194 = vmul.f32 %v1124, %v1188
      %v1195 = vmul.f32 %v1125, %v1188
      %v1196 = vmul.f32 %v1126, %v1188
      %v1197 = vmul.f32 %v1127, %v1188
      %v1198 = vmul.f32 %v1128, %v1188
      %v1199 = vmul.f32 %v1129, %v1188
      %v1200 = vmul.f32 %v1130, %v1188
      %v1201 = vmul.f32 %v1131, %v1188
      %v1202 = vmul.f32 %v1132, %v1188
      %v1203 = vmul.f32 %v1133, %v1188
      %v1204 = vmul.f32 %v1134, %v1188
      %v1205 = vmul.f32 %v1135, %v1188
      %v1206 = vmul.f32 %v1136, %v1188
      %v1207 = vmul.f32 %v1137, %v1188
      %v1208 = vmul.f32 %v1138, %v1188
      %v1209 = vmul.f32 %v1139, %v1188
      %v1210 = vmul.f32 %v1140, %v1188
      %v1211 = vmul.f32 %v1141, %v1188
      %v1212 = vmul.f32 %v1142, %v1188
      %v1213 = vmul.f32 %v1143, %v1188
      %v1214 = vmul.f32 %v1144, %v1188
      %v1215 = vmul.f32 %v1145, %v1188
      %v1216 = vmul.f32 %v1146, %v1188
      %v1217 = vmul.f32 %v1147, %v1188
      %v1218 = vmul.f32 %v1148, %v1188
      %v1219 = vmul.f32 %v1149, %v1188
      %v1220 = vmul.f32 %v1150, %v1188
      %v1221 = vmul.f32 %v1151, %v1188
      %v1222 = vmul.f32 %v1152, %v1188
      %v1223 = vmul.f32 %v1153, %v1188
      %v1224 = vmul.f32 %v1154, %v1188
      %v1225 = vmul.f32 %v1155, %v1188
      %v1226 = vmul.f32 %v1156, %v1188
      %v1227 = vmul.f32 %v1157, %v1188
      %v1228 = vmul.f32 %v1158, %v1188
      %v1229 = vmul.f32 %v1159, %v1188
      %v1230 = vmul.f32 %v1160, %v1188
      %v1231 = vmul.f32 %v1161, %v1188
      %v1232 = vmul.f32 %v1162, %v1188
      %v1233 = vmul.f32 %v1163, %v1188
      %v1234 = vmul.f32 %v1164, %v1188
      %v1235 = vmul.f32 %v1165, %v1188
      %v1236 = vmul.f32 %v1166, %v1188
      %v1237 = vmul.f32 %v1167, %v1188
      %v1238 = vmul.f32 %v1168, %v1188
      %v1239 = vmul.f32 %v1169, %v1188
      %v1240 = vmul.f32 %v1170, %v1188
      %v1241 = vmul.f32 %v1171, %v1188
      %v1242 = vmul.f32 %v1172, %v1188
      %v1243 = vmul.f32 %v1173, %v1188
      %v1244 = vmul.f32 %v1174, %v1188
      %v1245 = vmul.f32 %v1175, %v1188
      %v1246 = vmul.f32 %v1176, %v1188
      %v1247 = vmul.f32 %v1177, %v1188
      %v1248 = vmul.f32 %v1178, %v1188
      %v1249 = vmul.f32 %v1179, %v1188
      %v1250 = vmul.f32 %v1180, %v1188
      %v1251 = vmul.f32 %v1181, %v1188
      %v1252 = vmul.f32 %v1182, %v1188
      %v1253 = vmul.f32 %v1183, %v1188
      %v1255 = vlaneseq
      %v1256 = vshrl.u32 %v1255, 7
      %v1257 = vsub.s32 0, %v1256
      %v1258 = vrot.slane %v347, %v1257
      %v1260 = vadd.f32 %v1190, %v1258
      %v1261 = vadd.f32 %v1191, %v1258
      %v1262 = vadd.f32 %v1192, %v1258
      %v1263 = vadd.f32 %v1193, %v1258
      %v1264 = vadd.f32 %v1194, %v1258
      %v1265 = vadd.f32 %v1195, %v1258
      %v1266 = vadd.f32 %v1196, %v1258
      %v1267 = vadd.f32 %v1197, %v1258
      %v1268 = vadd.f32 %v1198, %v1258
      %v1269 = vadd.f32 %v1199, %v1258
      %v1270 = vadd.f32 %v1200, %v1258
      %v1271 = vadd.f32 %v1201, %v1258
      %v1272 = vadd.f32 %v1202, %v1258
      %v1273 = vadd.f32 %v1203, %v1258
      %v1274 = vadd.f32 %v1204, %v1258
      %v1275 = vadd.f32 %v1205, %v1258
      %v1276 = vadd.f32 %v1206, %v1258
      %v1277 = vadd.f32 %v1207, %v1258
      %v1278 = vadd.f32 %v1208, %v1258
      %v1279 = vadd.f32 %v1209, %v1258
      %v1280 = vadd.f32 %v1210, %v1258
      %v1281 = vadd.f32 %v1211, %v1258
      %v1282 = vadd.f32 %v1212, %v1258
      %v1283 = vadd.f32 %v1213, %v1258
      %v1284 = vadd.f32 %v1214, %v1258
      %v1285 = vadd.f32 %v1215, %v1258
      %v1286 = vadd.f32 %v1216, %v1258
      %v1287 = vadd.f32 %v1217, %v1258
      %v1288 = vadd.f32 %v1218, %v1258
      %v1289 = vadd.f32 %v1219, %v1258
      %v1290 = vadd.f32 %v1220, %v1258
      %v1291 = vadd.f32 %v1221, %v1258
      %v1292 = vadd.f32 %v1222, %v1258
      %v1293 = vadd.f32 %v1223, %v1258
      %v1294 = vadd.f32 %v1224, %v1258
      %v1295 = vadd.f32 %v1225, %v1258
      %v1296 = vadd.f32 %v1226, %v1258
      %v1297 = vadd.f32 %v1227, %v1258
      %v1298 = vadd.f32 %v1228, %v1258
      %v1299 = vadd.f32 %v1229, %v1258
      %v1300 = vadd.f32 %v1230, %v1258
      %v1301 = vadd.f32 %v1231, %v1258
      %v1302 = vadd.f32 %v1232, %v1258
      %v1303 = vadd.f32 %v1233, %v1258
      %v1304 = vadd.f32 %v1234, %v1258
      %v1305 = vadd.f32 %v1235, %v1258
      %v1306 = vadd.f32 %v1236, %v1258
      %v1307 = vadd.f32 %v1237, %v1258
      %v1308 = vadd.f32 %v1238, %v1258
      %v1309 = vadd.f32 %v1239, %v1258
      %v1310 = vadd.f32 %v1240, %v1258
      %v1311 = vadd.f32 %v1241, %v1258
      %v1312 = vadd.f32 %v1242, %v1258
      %v1313 = vadd.f32 %v1243, %v1258
      %v1314 = vadd.f32 %v1244, %v1258
      %v1315 = vadd.f32 %v1245, %v1258
      %v1316 = vadd.f32 %v1246, %v1258
      %v1317 = vadd.f32 %v1247, %v1258
      %v1318 = vadd.f32 %v1248, %v1258
      %v1319 = vadd.f32 %v1249, %v1258
      %v1320 = vadd.f32 %v1250, %v1258
      %v1321 = vadd.f32 %v1251, %v1258
      %v1322 = vadd.f32 %v1252, %v1258
      %v1323 = vadd.f32 %v1253, %v1258
      %v1324 = vld [vmem:[%s3] sm:$0xff]
      %v1325 = vld [vmem:[%s3 + $0x8] sm:$0xff]
      %v1326 = vld [vmem:[%s3 + $0x10] sm:$0xff]
      %v1327 = vld [vmem:[%s3 + $0x18] sm:$0xff]
      %v1329 = vlaneseq
      %v1330 = vshrl.u32 %v1329, 7
      %v1331 = vsub.s32 0, %v1330
      %v1332 = vrot.slane %v348, %v1331
      %v1335 = vsel %vm350, %v1260, 0
      %v1338 = vsel %vm350, %v1261, 0
      %v1341 = vsel %vm350, %v1262, 0
      %v1344 = vsel %vm350, %v1263, 0
      %v1347 = vsel %vm350, %v1264, 0
      %v1350 = vsel %vm350, %v1265, 0
      %v1353 = vsel %vm350, %v1266, 0
      %v1356 = vsel %vm350, %v1267, 0
      %v1359 = vsel %vm350, %v1268, 0
      %v1362 = vsel %vm350, %v1269, 0
      %v1365 = vsel %vm350, %v1270, 0
      %v1368 = vsel %vm350, %v1271, 0
      %v1371 = vsel %vm350, %v1272, 0
      %v1374 = vsel %vm350, %v1273, 0
      %v1377 = vsel %vm350, %v1274, 0
      %v1380 = vsel %vm350, %v1275, 0
      %v1383 = vsel %vm350, %v1276, 0
      %v1386 = vsel %vm350, %v1277, 0
      %v1389 = vsel %vm350, %v1278, 0
      %v1392 = vsel %vm350, %v1279, 0
      %v1395 = vsel %vm350, %v1280, 0
      %v1398 = vsel %vm350, %v1281, 0
      %v1401 = vsel %vm350, %v1282, 0
      %v1404 = vsel %vm350, %v1283, 0
      %v1407 = vsel %vm350, %v1284, 0
      %v1410 = vsel %vm350, %v1285, 0
      %v1413 = vsel %vm350, %v1286, 0
      %v1416 = vsel %vm350, %v1287, 0
      %v1419 = vsel %vm350, %v1288, 0
      %v1422 = vsel %vm350, %v1289, 0
      %v1425 = vsel %vm350, %v1290, 0
      %v1428 = vsel %vm350, %v1291, 0
      %v1431 = vsel %vm350, %v1292, 0
      %v1434 = vsel %vm350, %v1293, 0
      %v1437 = vsel %vm350, %v1294, 0
      %v1440 = vsel %vm350, %v1295, 0
      %v1443 = vsel %vm350, %v1296, 0
      %v1446 = vsel %vm350, %v1297, 0
      %v1449 = vsel %vm350, %v1298, 0
      %v1452 = vsel %vm350, %v1299, 0
      %v1455 = vsel %vm350, %v1300, 0
      %v1458 = vsel %vm350, %v1301, 0
      %v1461 = vsel %vm350, %v1302, 0
      %v1464 = vsel %vm350, %v1303, 0
      %v1467 = vsel %vm350, %v1304, 0
      %v1470 = vsel %vm350, %v1305, 0
      %v1473 = vsel %vm350, %v1306, 0
      %v1476 = vsel %vm350, %v1307, 0
      %v1479 = vsel %vm350, %v1308, 0
      %v1482 = vsel %vm350, %v1309, 0
      %v1485 = vsel %vm350, %v1310, 0
      %v1488 = vsel %vm350, %v1311, 0
      %v1491 = vsel %vm350, %v1312, 0
      %v1494 = vsel %vm350, %v1313, 0
      %v1497 = vsel %vm350, %v1314, 0
      %v1500 = vsel %vm350, %v1315, 0
      %v1503 = vsel %vm350, %v1316, 0
      %v1506 = vsel %vm350, %v1317, 0
      %v1509 = vsel %vm350, %v1318, 0
      %v1512 = vsel %vm350, %v1319, 0
      %v1515 = vsel %vm350, %v1320, 0
      %v1518 = vsel %vm350, %v1321, 0
      %v1521 = vsel %vm350, %v1322, 0
      %v1524 = vsel %vm350, %v1323, 0
      %1526 = vmatprep.subr.mxu0 0.0
      %1527 = vmatpush1.msra.mxu0 0.0
      %1528 = vmatprep.subr.mxu0 0.0
      %1529 = vmatpush1.msra.mxu0 0.0
      %1530 = vmatprep.subr.mxu0 0.0
      %1531 = vmatpush1.msra.mxu0 0.0
      %1532 = vmatprep.subr.mxu0 0.0
      %1533 = vmatpush1.msra.mxu0 0.0
      %1534 = vmatprep.subr.mxu0 0.0
      %1535 = vmatpush1.msra.mxu0 0.0
      %1536 = vmatprep.subr.mxu0 0.0
      %1537 = vmatpush1.msra.mxu0 0.0
      %1538 = vmatprep.subr.mxu0 0.0
      %1539 = vmatpush1.msra.mxu0 0.0
      %1540 = vmatprep.subr.mxu0 0.0
      %1541 = vmatpush1.msra.mxu0 0.0
      %1542 = vmatprep.subr.mxu0 0.0
      %1543 = vmatpush1.msra.mxu0 0.0
      %1544 = vmatprep.subr.mxu0 0.0
      %1545 = vmatpush1.msra.mxu0 0.0
      %1546 = vmatprep.subr.mxu0 0.0
      %1547 = vmatpush1.msra.mxu0 0.0
      %1548 = vmatprep.subr.mxu0 0.0
      %1549 = vmatpush1.msra.mxu0 0.0
      %1550 = vmatprep.subr.mxu0 0.0
      %1551 = vmatpush1.msra.mxu0 %v1327
      %1552 = vmatprep.subr.mxu0 0.0
      %1553 = vmatpush1.msra.mxu0 %v1326
      %1554 = vmatprep.subr.mxu0 0.0
      %1555 = vmatpush1.msra.mxu0 %v1325
      %1556 = vmatprep.subr.mxu0 0.0
      %1557 = vmatpush1.msra.mxu0 %v1324
      %1558 = vmatprep.subr.mxu0 0.0
      %1559 = vmatpush2.msra.mxu0 0.0
      %1560 = vmatprep.subr.mxu0 0.0
      %1561 = vmatpush2.msra.mxu0 0.0
      %1562 = vmatprep.subr.mxu0 0.0
      %1563 = vmatpush2.msra.mxu0 0.0
      %1564 = vmatprep.subr.mxu0 0.0
      %1565 = vmatpush2.msra.mxu0 0.0
      %1566 = vmatprep.subr.mxu0 0.0
      %1567 = vmatpush2.msra.mxu0 0.0
      %1568 = vmatprep.subr.mxu0 0.0
      %1569 = vmatpush2.msra.mxu0 0.0
      %1570 = vmatprep.subr.mxu0 0.0
      %1571 = vmatpush2.msra.mxu0 0.0
      %1572 = vmatprep.subr.mxu0 0.0
      %1573 = vmatpush2.msra.mxu0 0.0
      %1574 = vmatprep.subr.mxu0 0.0
      %1575 = vmatpush2.msra.mxu0 0.0
      %1576 = vmatprep.subr.mxu0 0.0
      %1577 = vmatpush2.msra.mxu0 0.0
      %1578 = vmatprep.subr.mxu0 0.0
      %1579 = vmatpush2.msra.mxu0 0.0
      %1580 = vmatprep.subr.mxu0 0.0
      %1581 = vmatpush2.msra.mxu0 0.0
      %1582 = vmatprep.subr.mxu0 0.0
      %1583 = vmatpush2.msra.mxu0 0.0
      %1584 = vmatprep.subr.mxu0 0.0
      %1585 = vmatpush2.msra.mxu0 0.0
      %1586 = vmatprep.subr.mxu0 0.0
      %1587 = vmatpush2.msra.mxu0 0.0
      %1588 = vmatprep.subr.mxu0 0.0
      %1589 = vmatpush2.msra.mxu0 0.0
      %1590 = vmatprep.mubr.f32.mxu0 0.0
      %1591 = vmatmul.mubr.f32.gmra.mxu0 %v1335
      %v1592 = vpop.f32.mrf.mxu0
      %v1593 = vadd.f32 %v1332, %v1592
      %v1594 = vpop.f32.mrf.mxu0
      %1595 = vmatprep.mubr.f32.mxu0 0.0
      %1596 = vmatmul.mubr.f32.gmra.mxu0 %v1338
      %v1597 = vpop.f32.mrf.mxu0
      %v1598 = vadd.f32 %v1332, %v1597
      %v1599 = vpop.f32.mrf.mxu0
      %1600 = vmatprep.mubr.f32.mxu0 0.0
      %1601 = vmatmul.mubr.f32.gmra.mxu0 %v1341
      %v1602 = vpop.f32.mrf.mxu0
      %v1603 = vadd.f32 %v1332, %v1602
      %v1604 = vpop.f32.mrf.mxu0
      %1605 = vmatprep.mubr.f32.mxu0 0.0
      %1606 = vmatmul.mubr.f32.gmra.mxu0 %v1344
      %v1607 = vpop.f32.mrf.mxu0
      %v1608 = vadd.f32 %v1332, %v1607
      %v1609 = vpop.f32.mrf.mxu0
      %1610 = vmatprep.mubr.f32.mxu0 0.0
      %1611 = vmatmul.mubr.f32.gmra.mxu0 %v1347
      %v1612 = vpop.f32.mrf.mxu0
      %v1613 = vadd.f32 %v1332, %v1612
      %v1614 = vpop.f32.mrf.mxu0
      %1615 = vmatprep.mubr.f32.mxu0 0.0
      %1616 = vmatmul.mubr.f32.gmra.mxu0 %v1350
      %v1617 = vpop.f32.mrf.mxu0
      %v1618 = vadd.f32 %v1332, %v1617
      %v1619 = vpop.f32.mrf.mxu0
      %1620 = vmatprep.mubr.f32.mxu0 0.0
      %1621 = vmatmul.mubr.f32.gmra.mxu0 %v1353
      %v1622 = vpop.f32.mrf.mxu0
      %v1623 = vadd.f32 %v1332, %v1622
      %v1624 = vpop.f32.mrf.mxu0
      %1625 = vmatprep.mubr.f32.mxu0 0.0
      %1626 = vmatmul.mubr.f32.gmra.mxu0 %v1356
      %v1627 = vpop.f32.mrf.mxu0
      %v1628 = vadd.f32 %v1332, %v1627
      %v1629 = vpop.f32.mrf.mxu0
      %1630 = vmatprep.mubr.f32.mxu0 0.0
      %1631 = vmatmul.mubr.f32.gmra.mxu0 %v1359
      %v1632 = vpop.f32.mrf.mxu0
      %v1633 = vadd.f32 %v1332, %v1632
      %v1634 = vpop.f32.mrf.mxu0
      %1635 = vmatprep.mubr.f32.mxu0 0.0
      %1636 = vmatmul.mubr.f32.gmra.mxu0 %v1362
      %v1637 = vpop.f32.mrf.mxu0
      %v1638 = vadd.f32 %v1332, %v1637
      %v1639 = vpop.f32.mrf.mxu0
      %1640 = vmatprep.mubr.f32.mxu0 0.0
      %1641 = vmatmul.mubr.f32.gmra.mxu0 %v1365
      %v1642 = vpop.f32.mrf.mxu0
      %v1643 = vadd.f32 %v1332, %v1642
      %v1644 = vpop.f32.mrf.mxu0
      %1645 = vmatprep.mubr.f32.mxu0 0.0
      %1646 = vmatmul.mubr.f32.gmra.mxu0 %v1368
      %v1647 = vpop.f32.mrf.mxu0
      %v1648 = vadd.f32 %v1332, %v1647
      %v1649 = vpop.f32.mrf.mxu0
      %1650 = vmatprep.mubr.f32.mxu0 0.0
      %1651 = vmatmul.mubr.f32.gmra.mxu0 %v1371
      %v1652 = vpop.f32.mrf.mxu0
      %v1653 = vadd.f32 %v1332, %v1652
      %v1654 = vpop.f32.mrf.mxu0
      %1655 = vmatprep.mubr.f32.mxu0 0.0
      %1656 = vmatmul.mubr.f32.gmra.mxu0 %v1374
      %v1657 = vpop.f32.mrf.mxu0
      %v1658 = vadd.f32 %v1332, %v1657
      %v1659 = vpop.f32.mrf.mxu0
      %1660 = vmatprep.mubr.f32.mxu0 0.0
      %1661 = vmatmul.mubr.f32.gmra.mxu0 %v1377
      %v1662 = vpop.f32.mrf.mxu0
      %v1663 = vadd.f32 %v1332, %v1662
      %v1664 = vpop.f32.mrf.mxu0
      %1665 = vmatprep.mubr.f32.mxu0 0.0
      %1666 = vmatmul.mubr.f32.gmra.mxu0 %v1380
      %v1667 = vpop.f32.mrf.mxu0
      %v1668 = vadd.f32 %v1332, %v1667
      %v1669 = vpop.f32.mrf.mxu0
      %1670 = vmatprep.mubr.f32.mxu0 0.0
      %1671 = vmatmul.mubr.f32.gmra.mxu0 %v1383
      %v1672 = vpop.f32.mrf.mxu0
      %v1673 = vadd.f32 %v1332, %v1672
      %v1674 = vpop.f32.mrf.mxu0
      %1675 = vmatprep.mubr.f32.mxu0 0.0
      %1676 = vmatmul.mubr.f32.gmra.mxu0 %v1386
      %v1677 = vpop.f32.mrf.mxu0
      %v1678 = vadd.f32 %v1332, %v1677
      %v1679 = vpop.f32.mrf.mxu0
      %1680 = vmatprep.mubr.f32.mxu0 0.0
      %1681 = vmatmul.mubr.f32.gmra.mxu0 %v1389
      %v1682 = vpop.f32.mrf.mxu0
      %v1683 = vadd.f32 %v1332, %v1682
      %v1684 = vpop.f32.mrf.mxu0
      %1685 = vmatprep.mubr.f32.mxu0 0.0
      %1686 = vmatmul.mubr.f32.gmra.mxu0 %v1392
      %v1687 = vpop.f32.mrf.mxu0
      %v1688 = vadd.f32 %v1332, %v1687
      %v1689 = vpop.f32.mrf.mxu0
      %1690 = vmatprep.mubr.f32.mxu0 0.0
      %1691 = vmatmul.mubr.f32.gmra.mxu0 %v1395
      %v1692 = vpop.f32.mrf.mxu0
      %v1693 = vadd.f32 %v1332, %v1692
      %v1694 = vpop.f32.mrf.mxu0
      %1695 = vmatprep.mubr.f32.mxu0 0.0
      %1696 = vmatmul.mubr.f32.gmra.mxu0 %v1398
      %v1697 = vpop.f32.mrf.mxu0
      %v1698 = vadd.f32 %v1332, %v1697
      %v1699 = vpop.f32.mrf.mxu0
      %1700 = vmatprep.mubr.f32.mxu0 0.0
      %1701 = vmatmul.mubr.f32.gmra.mxu0 %v1401
      %v1702 = vpop.f32.mrf.mxu0
      %v1703 = vadd.f32 %v1332, %v1702
      %v1704 = vpop.f32.mrf.mxu0
      %1705 = vmatprep.mubr.f32.mxu0 0.0
      %1706 = vmatmul.mubr.f32.gmra.mxu0 %v1404
      %v1707 = vpop.f32.mrf.mxu0
      %v1708 = vadd.f32 %v1332, %v1707
      %v1709 = vpop.f32.mrf.mxu0
      %1710 = vmatprep.mubr.f32.mxu0 0.0
      %1711 = vmatmul.mubr.f32.gmra.mxu0 %v1407
      %v1712 = vpop.f32.mrf.mxu0
      %v1713 = vadd.f32 %v1332, %v1712
      %v1714 = vpop.f32.mrf.mxu0
      %1715 = vmatprep.mubr.f32.mxu0 0.0
      %1716 = vmatmul.mubr.f32.gmra.mxu0 %v1410
      %v1717 = vpop.f32.mrf.mxu0
      %v1718 = vadd.f32 %v1332, %v1717
      %v1719 = vpop.f32.mrf.mxu0
      %1720 = vmatprep.mubr.f32.mxu0 0.0
      %1721 = vmatmul.mubr.f32.gmra.mxu0 %v1413
      %v1722 = vpop.f32.mrf.mxu0
      %v1723 = vadd.f32 %v1332, %v1722
      %v1724 = vpop.f32.mrf.mxu0
      %1725 = vmatprep.mubr.f32.mxu0 0.0
      %1726 = vmatmul.mubr.f32.gmra.mxu0 %v1416
      %v1727 = vpop.f32.mrf.mxu0
      %v1728 = vadd.f32 %v1332, %v1727
      %v1729 = vpop.f32.mrf.mxu0
      %1730 = vmatprep.mubr.f32.mxu0 0.0
      %1731 = vmatmul.mubr.f32.gmra.mxu0 %v1419
      %v1732 = vpop.f32.mrf.mxu0
      %v1733 = vadd.f32 %v1332, %v1732
      %v1734 = vpop.f32.mrf.mxu0
      %1735 = vmatprep.mubr.f32.mxu0 0.0
      %1736 = vmatmul.mubr.f32.gmra.mxu0 %v1422
      %v1737 = vpop.f32.mrf.mxu0
      %v1738 = vadd.f32 %v1332, %v1737
      %v1739 = vpop.f32.mrf.mxu0
      %1740 = vmatprep.mubr.f32.mxu0 0.0
      %1741 = vmatmul.mubr.f32.gmra.mxu0 %v1425
      %v1742 = vpop.f32.mrf.mxu0
      %v1743 = vadd.f32 %v1332, %v1742
      %v1744 = vpop.f32.mrf.mxu0
      %1745 = vmatprep.mubr.f32.mxu0 0.0
      %1746 = vmatmul.mubr.f32.gmra.mxu0 %v1428
      %v1747 = vpop.f32.mrf.mxu0
      %v1748 = vadd.f32 %v1332, %v1747
      %v1749 = vpop.f32.mrf.mxu0
      %1750 = vmatprep.mubr.f32.mxu0 0.0
      %1751 = vmatmul.mubr.f32.gmra.mxu0 %v1431
      %v1752 = vpop.f32.mrf.mxu0
      %v1753 = vadd.f32 %v1332, %v1752
      %v1754 = vpop.f32.mrf.mxu0
      %1755 = vmatprep.mubr.f32.mxu0 0.0
      %1756 = vmatmul.mubr.f32.gmra.mxu0 %v1434
      %v1757 = vpop.f32.mrf.mxu0
      %v1758 = vadd.f32 %v1332, %v1757
      %v1759 = vpop.f32.mrf.mxu0
      %1760 = vmatprep.mubr.f32.mxu0 0.0
      %1761 = vmatmul.mubr.f32.gmra.mxu0 %v1437
      %v1762 = vpop.f32.mrf.mxu0
      %v1763 = vadd.f32 %v1332, %v1762
      %v1764 = vpop.f32.mrf.mxu0
      %1765 = vmatprep.mubr.f32.mxu0 0.0
      %1766 = vmatmul.mubr.f32.gmra.mxu0 %v1440
      %v1767 = vpop.f32.mrf.mxu0
      %v1768 = vadd.f32 %v1332, %v1767
      %v1769 = vpop.f32.mrf.mxu0
      %1770 = vmatprep.mubr.f32.mxu0 0.0
      %1771 = vmatmul.mubr.f32.gmra.mxu0 %v1443
      %v1772 = vpop.f32.mrf.mxu0
      %v1773 = vadd.f32 %v1332, %v1772
      %v1774 = vpop.f32.mrf.mxu0
      %1775 = vmatprep.mubr.f32.mxu0 0.0
      %1776 = vmatmul.mubr.f32.gmra.mxu0 %v1446
      %v1777 = vpop.f32.mrf.mxu0
      %v1778 = vadd.f32 %v1332, %v1777
      %v1779 = vpop.f32.mrf.mxu0
      %1780 = vmatprep.mubr.f32.mxu0 0.0
      %1781 = vmatmul.mubr.f32.gmra.mxu0 %v1449
      %v1782 = vpop.f32.mrf.mxu0
      %v1783 = vadd.f32 %v1332, %v1782
      %v1784 = vpop.f32.mrf.mxu0
      %1785 = vmatprep.mubr.f32.mxu0 0.0
      %1786 = vmatmul.mubr.f32.gmra.mxu0 %v1452
      %v1787 = vpop.f32.mrf.mxu0
      %v1788 = vadd.f32 %v1332, %v1787
      %v1789 = vpop.f32.mrf.mxu0
      %1790 = vmatprep.mubr.f32.mxu0 0.0
      %1791 = vmatmul.mubr.f32.gmra.mxu0 %v1455
      %v1792 = vpop.f32.mrf.mxu0
      %v1793 = vadd.f32 %v1332, %v1792
      %v1794 = vpop.f32.mrf.mxu0
      %1795 = vmatprep.mubr.f32.mxu0 0.0
      %1796 = vmatmul.mubr.f32.gmra.mxu0 %v1458
      %v1797 = vpop.f32.mrf.mxu0
      %v1798 = vadd.f32 %v1332, %v1797
      %v1799 = vpop.f32.mrf.mxu0
      %1800 = vmatprep.mubr.f32.mxu0 0.0
      %1801 = vmatmul.mubr.f32.gmra.mxu0 %v1461
      %v1802 = vpop.f32.mrf.mxu0
      %v1803 = vadd.f32 %v1332, %v1802
      %v1804 = vpop.f32.mrf.mxu0
      %1805 = vmatprep.mubr.f32.mxu0 0.0
      %1806 = vmatmul.mubr.f32.gmra.mxu0 %v1464
      %v1807 = vpop.f32.mrf.mxu0
      %v1808 = vadd.f32 %v1332, %v1807
      %v1809 = vpop.f32.mrf.mxu0
      %1810 = vmatprep.mubr.f32.mxu0 0.0
      %1811 = vmatmul.mubr.f32.gmra.mxu0 %v1467
      %v1812 = vpop.f32.mrf.mxu0
      %v1813 = vadd.f32 %v1332, %v1812
      %v1814 = vpop.f32.mrf.mxu0
      %1815 = vmatprep.mubr.f32.mxu0 0.0
      %1816 = vmatmul.mubr.f32.gmra.mxu0 %v1470
      %v1817 = vpop.f32.mrf.mxu0
      %v1818 = vadd.f32 %v1332, %v1817
      %v1819 = vpop.f32.mrf.mxu0
      %1820 = vmatprep.mubr.f32.mxu0 0.0
      %1821 = vmatmul.mubr.f32.gmra.mxu0 %v1473
      %v1822 = vpop.f32.mrf.mxu0
      %v1823 = vadd.f32 %v1332, %v1822
      %v1824 = vpop.f32.mrf.mxu0
      %1825 = vmatprep.mubr.f32.mxu0 0.0
      %1826 = vmatmul.mubr.f32.gmra.mxu0 %v1476
      %v1827 = vpop.f32.mrf.mxu0
      %v1828 = vadd.f32 %v1332, %v1827
      %v1829 = vpop.f32.mrf.mxu0
      %1830 = vmatprep.mubr.f32.mxu0 0.0
      %1831 = vmatmul.mubr.f32.gmra.mxu0 %v1479
      %v1832 = vpop.f32.mrf.mxu0
      %v1833 = vadd.f32 %v1332, %v1832
      %v1834 = vpop.f32.mrf.mxu0
      %1835 = vmatprep.mubr.f32.mxu0 0.0
      %1836 = vmatmul.mubr.f32.gmra.mxu0 %v1482
      %v1837 = vpop.f32.mrf.mxu0
      %v1838 = vadd.f32 %v1332, %v1837
      %v1839 = vpop.f32.mrf.mxu0
      %1840 = vmatprep.mubr.f32.mxu0 0.0
      %1841 = vmatmul.mubr.f32.gmra.mxu0 %v1485
      %v1842 = vpop.f32.mrf.mxu0
      %v1843 = vadd.f32 %v1332, %v1842
      %v1844 = vpop.f32.mrf.mxu0
      %1845 = vmatprep.mubr.f32.mxu0 0.0
      %1846 = vmatmul.mubr.f32.gmra.mxu0 %v1488
      %v1847 = vpop.f32.mrf.mxu0
      %v1848 = vadd.f32 %v1332, %v1847
      %v1849 = vpop.f32.mrf.mxu0
      %1850 = vmatprep.mubr.f32.mxu0 0.0
      %1851 = vmatmul.mubr.f32.gmra.mxu0 %v1491
      %v1852 = vpop.f32.mrf.mxu0
      %v1853 = vadd.f32 %v1332, %v1852
      %v1854 = vpop.f32.mrf.mxu0
      %1855 = vmatprep.mubr.f32.mxu0 0.0
      %1856 = vmatmul.mubr.f32.gmra.mxu0 %v1494
      %v1857 = vpop.f32.mrf.mxu0
      %v1858 = vadd.f32 %v1332, %v1857
      %v1859 = vpop.f32.mrf.mxu0
      %1860 = vmatprep.mubr.f32.mxu0 0.0
      %1861 = vmatmul.mubr.f32.gmra.mxu0 %v1497
      %v1862 = vpop.f32.mrf.mxu0
      %v1863 = vadd.f32 %v1332, %v1862
      %v1864 = vpop.f32.mrf.mxu0
      %1865 = vmatprep.mubr.f32.mxu0 0.0
      %1866 = vmatmul.mubr.f32.gmra.mxu0 %v1500
      %v1867 = vpop.f32.mrf.mxu0
      %v1868 = vadd.f32 %v1332, %v1867
      %v1869 = vpop.f32.mrf.mxu0
      %1870 = vmatprep.mubr.f32.mxu0 0.0
      %1871 = vmatmul.mubr.f32.gmra.mxu0 %v1503
      %v1872 = vpop.f32.mrf.mxu0
      %v1873 = vadd.f32 %v1332, %v1872
      %v1874 = vpop.f32.mrf.mxu0
      %1875 = vmatprep.mubr.f32.mxu0 0.0
      %1876 = vmatmul.mubr.f32.gmra.mxu0 %v1506
      %v1877 = vpop.f32.mrf.mxu0
      %v1878 = vadd.f32 %v1332, %v1877
      %v1879 = vpop.f32.mrf.mxu0
      %1880 = vmatprep.mubr.f32.mxu0 0.0
      %1881 = vmatmul.mubr.f32.gmra.mxu0 %v1509
      %v1882 = vpop.f32.mrf.mxu0
      %v1883 = vadd.f32 %v1332, %v1882
      %v1884 = vpop.f32.mrf.mxu0
      %1885 = vmatprep.mubr.f32.mxu0 0.0
      %1886 = vmatmul.mubr.f32.gmra.mxu0 %v1512
      %v1887 = vpop.f32.mrf.mxu0
      %v1888 = vadd.f32 %v1332, %v1887
      %v1889 = vpop.f32.mrf.mxu0
      %1890 = vmatprep.mubr.f32.mxu0 0.0
      %1891 = vmatmul.mubr.f32.gmra.mxu0 %v1515
      %v1892 = vpop.f32.mrf.mxu0
      %v1893 = vadd.f32 %v1332, %v1892
      %v1894 = vpop.f32.mrf.mxu0
      %1895 = vmatprep.mubr.f32.mxu0 0.0
      %1896 = vmatmul.mubr.f32.gmra.mxu0 %v1518
      %v1897 = vpop.f32.mrf.mxu0
      %v1898 = vadd.f32 %v1332, %v1897
      %v1899 = vpop.f32.mrf.mxu0
      %1900 = vmatprep.mubr.f32.mxu0 0.0
      %1901 = vmatmul.mubr.f32.gmra.mxu0 %v1521
      %v1902 = vpop.f32.mrf.mxu0
      %v1903 = vadd.f32 %v1332, %v1902
      %v1904 = vpop.f32.mrf.mxu0
      %1905 = vmatprep.mubr.f32.mxu0 0.0
      %1906 = vmatmul.mubr.f32.gmra.mxu0 %v1524
      %v1907 = vpop.f32.mrf.mxu0
      %v1908 = vadd.f32 %v1332, %v1907
      %v1909 = vpop.f32.mrf.mxu0
      %1910 = vdwg.mxu0
      %v1911 = vmul.f32 %v1593, 0.5
      %v1912 = vmul.f32 %v1598, 0.5
      %v1913 = vmul.f32 %v1603, 0.5
      %v1914 = vmul.f32 %v1608, 0.5
      %v1915 = vmul.f32 %v1613, 0.5
      %v1916 = vmul.f32 %v1618, 0.5
      %v1917 = vmul.f32 %v1623, 0.5
      %v1918 = vmul.f32 %v1628, 0.5
      %v1919 = vmul.f32 %v1633, 0.5
      %v1920 = vmul.f32 %v1638, 0.5
      %v1921 = vmul.f32 %v1643, 0.5
      %v1922 = vmul.f32 %v1648, 0.5
      %v1923 = vmul.f32 %v1653, 0.5
      %v1924 = vmul.f32 %v1658, 0.5
      %v1925 = vmul.f32 %v1663, 0.5
      %v1926 = vmul.f32 %v1668, 0.5
      %v1927 = vmul.f32 %v1673, 0.5
      %v1928 = vmul.f32 %v1678, 0.5
      %v1929 = vmul.f32 %v1683, 0.5
      %v1930 = vmul.f32 %v1688, 0.5
      %v1931 = vmul.f32 %v1693, 0.5
      %v1932 = vmul.f32 %v1698, 0.5
      %v1933 = vmul.f32 %v1703, 0.5
      %v1934 = vmul.f32 %v1708, 0.5
      %v1935 = vmul.f32 %v1713, 0.5
      %v1936 = vmul.f32 %v1718, 0.5
      %v1937 = vmul.f32 %v1723, 0.5
      %v1938 = vmul.f32 %v1728, 0.5
      %v1939 = vmul.f32 %v1733, 0.5
      %v1940 = vmul.f32 %v1738, 0.5
      %v1941 = vmul.f32 %v1743, 0.5
      %v1942 = vmul.f32 %v1748, 0.5
      %v1943 = vmul.f32 %v1753, 0.5
      %v1944 = vmul.f32 %v1758, 0.5
      %v1945 = vmul.f32 %v1763, 0.5
      %v1946 = vmul.f32 %v1768, 0.5
      %v1947 = vmul.f32 %v1773, 0.5
      %v1948 = vmul.f32 %v1778, 0.5
      %v1949 = vmul.f32 %v1783, 0.5
      %v1950 = vmul.f32 %v1788, 0.5
      %v1951 = vmul.f32 %v1793, 0.5
      %v1952 = vmul.f32 %v1798, 0.5
      %v1953 = vmul.f32 %v1803, 0.5
      %v1954 = vmul.f32 %v1808, 0.5
      %v1955 = vmul.f32 %v1813, 0.5
      %v1956 = vmul.f32 %v1818, 0.5
      %v1957 = vmul.f32 %v1823, 0.5
      %v1958 = vmul.f32 %v1828, 0.5
      %v1959 = vmul.f32 %v1833, 0.5
      %v1960 = vmul.f32 %v1838, 0.5
      %v1961 = vmul.f32 %v1843, 0.5
      %v1962 = vmul.f32 %v1848, 0.5
      %v1963 = vmul.f32 %v1853, 0.5
      %v1964 = vmul.f32 %v1858, 0.5
      %v1965 = vmul.f32 %v1863, 0.5
      %v1966 = vmul.f32 %v1868, 0.5
      %v1967 = vmul.f32 %v1873, 0.5
      %v1968 = vmul.f32 %v1878, 0.5
      %v1969 = vmul.f32 %v1883, 0.5
      %v1970 = vmul.f32 %v1888, 0.5
      %v1971 = vmul.f32 %v1893, 0.5
      %v1972 = vmul.f32 %v1898, 0.5
      %v1973 = vmul.f32 %v1903, 0.5
      %v1974 = vmul.f32 %v1908, 0.5
      %v1975 = vmul.f32 %v1593, 0.70710677
      %v1976 = vmul.f32 %v1598, 0.70710677
      %v1977 = vmul.f32 %v1603, 0.70710677
      %v1978 = vmul.f32 %v1608, 0.70710677
      %v1979 = vmul.f32 %v1613, 0.70710677
      %v1980 = vmul.f32 %v1618, 0.70710677
      %v1981 = vmul.f32 %v1623, 0.70710677
      %v1982 = vmul.f32 %v1628, 0.70710677
      %v1983 = vmul.f32 %v1633, 0.70710677
      %v1984 = vmul.f32 %v1638, 0.70710677
      %v1985 = vmul.f32 %v1643, 0.70710677
      %v1986 = vmul.f32 %v1648, 0.70710677
      %v1987 = vmul.f32 %v1653, 0.70710677
      %v1988 = vmul.f32 %v1658, 0.70710677
      %v1989 = vmul.f32 %v1663, 0.70710677
      %v1990 = vmul.f32 %v1668, 0.70710677
      %v1991 = vmul.f32 %v1673, 0.70710677
      %v1992 = vmul.f32 %v1678, 0.70710677
      %v1993 = vmul.f32 %v1683, 0.70710677
      %v1994 = vmul.f32 %v1688, 0.70710677
      %v1995 = vmul.f32 %v1693, 0.70710677
      %v1996 = vmul.f32 %v1698, 0.70710677
      %v1997 = vmul.f32 %v1703, 0.70710677
      %v1998 = vmul.f32 %v1708, 0.70710677
      %v1999 = vmul.f32 %v1713, 0.70710677
      %v2000 = vmul.f32 %v1718, 0.70710677
      %v2001 = vmul.f32 %v1723, 0.70710677
      %v2002 = vmul.f32 %v1728, 0.70710677
      %v2003 = vmul.f32 %v1733, 0.70710677
      %v2004 = vmul.f32 %v1738, 0.70710677
      %v2005 = vmul.f32 %v1743, 0.70710677
      %v2006 = vmul.f32 %v1748, 0.70710677
      %v2007 = vmul.f32 %v1753, 0.70710677
      %v2008 = vmul.f32 %v1758, 0.70710677
      %v2009 = vmul.f32 %v1763, 0.70710677
      %v2010 = vmul.f32 %v1768, 0.70710677
      %v2011 = vmul.f32 %v1773, 0.70710677
      %v2012 = vmul.f32 %v1778, 0.70710677
      %v2013 = vmul.f32 %v1783, 0.70710677
      %v2014 = vmul.f32 %v1788, 0.70710677
      %v2015 = vmul.f32 %v1793, 0.70710677
      %v2016 = vmul.f32 %v1798, 0.70710677
      %v2017 = vmul.f32 %v1803, 0.70710677
      %v2018 = vmul.f32 %v1808, 0.70710677
      %v2019 = vmul.f32 %v1813, 0.70710677
      %v2020 = vmul.f32 %v1818, 0.70710677
      %v2021 = vmul.f32 %v1823, 0.70710677
      %v2022 = vmul.f32 %v1828, 0.70710677
      %v2023 = vmul.f32 %v1833, 0.70710677
      %v2024 = vmul.f32 %v1838, 0.70710677
      %v2025 = vmul.f32 %v1843, 0.70710677
      %v2026 = vmul.f32 %v1848, 0.70710677
      %v2027 = vmul.f32 %v1853, 0.70710677
      %v2028 = vmul.f32 %v1858, 0.70710677
      %v2029 = vmul.f32 %v1863, 0.70710677
      %v2030 = vmul.f32 %v1868, 0.70710677
      %v2031 = vmul.f32 %v1873, 0.70710677
      %v2032 = vmul.f32 %v1878, 0.70710677
      %v2033 = vmul.f32 %v1883, 0.70710677
      %v2034 = vmul.f32 %v1888, 0.70710677
      %v2035 = vmul.f32 %v1893, 0.70710677
      %v2036 = vmul.f32 %v1898, 0.70710677
      %v2037 = vmul.f32 %v1903, 0.70710677
      %v2038 = vmul.f32 %v1908, 0.70710677
      %v2039 = verf.f32.pop %v1975
      %v2040 = verf.f32.pop %v1976
      %v2041 = verf.f32.pop %v1977
      %v2042 = verf.f32.pop %v1978
      %v2043 = verf.f32.pop %v1979
      %v2044 = verf.f32.pop %v1980
      %v2045 = verf.f32.pop %v1981
      %v2046 = verf.f32.pop %v1982
      %v2047 = verf.f32.pop %v1983
      %v2048 = verf.f32.pop %v1984
      %v2049 = verf.f32.pop %v1985
      %v2050 = verf.f32.pop %v1986
      %v2051 = verf.f32.pop %v1987
      %v2052 = verf.f32.pop %v1988
      %v2053 = verf.f32.pop %v1989
      %v2054 = verf.f32.pop %v1990
      %v2055 = verf.f32.pop %v1991
      %v2056 = verf.f32.pop %v1992
      %v2057 = verf.f32.pop %v1993
      %v2058 = verf.f32.pop %v1994
      %v2059 = verf.f32.pop %v1995
      %v2060 = verf.f32.pop %v1996
      %v2061 = verf.f32.pop %v1997
      %v2062 = verf.f32.pop %v1998
      %v2063 = verf.f32.pop %v1999
      %v2064 = verf.f32.pop %v2000
      %v2065 = verf.f32.pop %v2001
      %v2066 = verf.f32.pop %v2002
      %v2067 = verf.f32.pop %v2003
      %v2068 = verf.f32.pop %v2004
      %v2069 = verf.f32.pop %v2005
      %v2070 = verf.f32.pop %v2006
      %v2071 = verf.f32.pop %v2007
      %v2072 = verf.f32.pop %v2008
      %v2073 = verf.f32.pop %v2009
      %v2074 = verf.f32.pop %v2010
      %v2075 = verf.f32.pop %v2011
      %v2076 = verf.f32.pop %v2012
      %v2077 = verf.f32.pop %v2013
      %v2078 = verf.f32.pop %v2014
      %v2079 = verf.f32.pop %v2015
      %v2080 = verf.f32.pop %v2016
      %v2081 = verf.f32.pop %v2017
      %v2082 = verf.f32.pop %v2018
      %v2083 = verf.f32.pop %v2019
      %v2084 = verf.f32.pop %v2020
      %v2085 = verf.f32.pop %v2021
      %v2086 = verf.f32.pop %v2022
      %v2087 = verf.f32.pop %v2023
      %v2088 = verf.f32.pop %v2024
      %v2089 = verf.f32.pop %v2025
      %v2090 = verf.f32.pop %v2026
      %v2091 = verf.f32.pop %v2027
      %v2092 = verf.f32.pop %v2028
      %v2093 = verf.f32.pop %v2029
      %v2094 = verf.f32.pop %v2030
      %v2095 = verf.f32.pop %v2031
      %v2096 = verf.f32.pop %v2032
      %v2097 = verf.f32.pop %v2033
      %v2098 = verf.f32.pop %v2034
      %v2099 = verf.f32.pop %v2035
      %v2100 = verf.f32.pop %v2036
      %v2101 = verf.f32.pop %v2037
      %v2102 = verf.f32.pop %v2038
      %v2103 = vadd.f32 %v2039, 1.0
      %v2104 = vadd.f32 %v2040, 1.0
      %v2105 = vadd.f32 %v2041, 1.0
      %v2106 = vadd.f32 %v2042, 1.0
      %v2107 = vadd.f32 %v2043, 1.0
      %v2108 = vadd.f32 %v2044, 1.0
      %v2109 = vadd.f32 %v2045, 1.0
      %v2110 = vadd.f32 %v2046, 1.0
      %v2111 = vadd.f32 %v2047, 1.0
      %v2112 = vadd.f32 %v2048, 1.0
      %v2113 = vadd.f32 %v2049, 1.0
      %v2114 = vadd.f32 %v2050, 1.0
      %v2115 = vadd.f32 %v2051, 1.0
      %v2116 = vadd.f32 %v2052, 1.0
      %v2117 = vadd.f32 %v2053, 1.0
      %v2118 = vadd.f32 %v2054, 1.0
      %v2119 = vadd.f32 %v2055, 1.0
      %v2120 = vadd.f32 %v2056, 1.0
      %v2121 = vadd.f32 %v2057, 1.0
      %v2122 = vadd.f32 %v2058, 1.0
      %v2123 = vadd.f32 %v2059, 1.0
      %v2124 = vadd.f32 %v2060, 1.0
      %v2125 = vadd.f32 %v2061, 1.0
      %v2126 = vadd.f32 %v2062, 1.0
      %v2127 = vadd.f32 %v2063, 1.0
      %v2128 = vadd.f32 %v2064, 1.0
      %v2129 = vadd.f32 %v2065, 1.0
      %v2130 = vadd.f32 %v2066, 1.0
      %v2131 = vadd.f32 %v2067, 1.0
      %v2132 = vadd.f32 %v2068, 1.0
      %v2133 = vadd.f32 %v2069, 1.0
      %v2134 = vadd.f32 %v2070, 1.0
      %v2135 = vadd.f32 %v2071, 1.0
      %v2136 = vadd.f32 %v2072, 1.0
      %v2137 = vadd.f32 %v2073, 1.0
      %v2138 = vadd.f32 %v2074, 1.0
      %v2139 = vadd.f32 %v2075, 1.0
      %v2140 = vadd.f32 %v2076, 1.0
      %v2141 = vadd.f32 %v2077, 1.0
      %v2142 = vadd.f32 %v2078, 1.0
      %v2143 = vadd.f32 %v2079, 1.0
      %v2144 = vadd.f32 %v2080, 1.0
      %v2145 = vadd.f32 %v2081, 1.0
      %v2146 = vadd.f32 %v2082, 1.0
      %v2147 = vadd.f32 %v2083, 1.0
      %v2148 = vadd.f32 %v2084, 1.0
      %v2149 = vadd.f32 %v2085, 1.0
      %v2150 = vadd.f32 %v2086, 1.0
      %v2151 = vadd.f32 %v2087, 1.0
      %v2152 = vadd.f32 %v2088, 1.0
      %v2153 = vadd.f32 %v2089, 1.0
      %v2154 = vadd.f32 %v2090, 1.0
      %v2155 = vadd.f32 %v2091, 1.0
      %v2156 = vadd.f32 %v2092, 1.0
      %v2157 = vadd.f32 %v2093, 1.0
      %v2158 = vadd.f32 %v2094, 1.0
      %v2159 = vadd.f32 %v2095, 1.0
      %v2160 = vadd.f32 %v2096, 1.0
      %v2161 = vadd.f32 %v2097, 1.0
      %v2162 = vadd.f32 %v2098, 1.0
      %v2163 = vadd.f32 %v2099, 1.0
      %v2164 = vadd.f32 %v2100, 1.0
      %v2165 = vadd.f32 %v2101, 1.0
      %v2166 = vadd.f32 %v2102, 1.0
      %v2167 = vmul.f32 %v1911, %v2103
      %v2168 = vmul.f32 %v1912, %v2104
      %v2169 = vmul.f32 %v1913, %v2105
      %v2170 = vmul.f32 %v1914, %v2106
      %v2171 = vmul.f32 %v1915, %v2107
      %v2172 = vmul.f32 %v1916, %v2108
      %v2173 = vmul.f32 %v1917, %v2109
      %v2174 = vmul.f32 %v1918, %v2110
      %v2175 = vmul.f32 %v1919, %v2111
      %v2176 = vmul.f32 %v1920, %v2112
      %v2177 = vmul.f32 %v1921, %v2113
      %v2178 = vmul.f32 %v1922, %v2114
      %v2179 = vmul.f32 %v1923, %v2115
      %v2180 = vmul.f32 %v1924, %v2116
      %v2181 = vmul.f32 %v1925, %v2117
      %v2182 = vmul.f32 %v1926, %v2118
      %v2183 = vmul.f32 %v1927, %v2119
      %v2184 = vmul.f32 %v1928, %v2120
      %v2185 = vmul.f32 %v1929, %v2121
      %v2186 = vmul.f32 %v1930, %v2122
      %v2187 = vmul.f32 %v1931, %v2123
      %v2188 = vmul.f32 %v1932, %v2124
      %v2189 = vmul.f32 %v1933, %v2125
      %v2190 = vmul.f32 %v1934, %v2126
      %v2191 = vmul.f32 %v1935, %v2127
      %v2192 = vmul.f32 %v1936, %v2128
      %v2193 = vmul.f32 %v1937, %v2129
      %v2194 = vmul.f32 %v1938, %v2130
      %v2195 = vmul.f32 %v1939, %v2131
      %v2196 = vmul.f32 %v1940, %v2132
      %v2197 = vmul.f32 %v1941, %v2133
      %v2198 = vmul.f32 %v1942, %v2134
      %v2199 = vmul.f32 %v1943, %v2135
      %v2200 = vmul.f32 %v1944, %v2136
      %v2201 = vmul.f32 %v1945, %v2137
      %v2202 = vmul.f32 %v1946, %v2138
      %v2203 = vmul.f32 %v1947, %v2139
      %v2204 = vmul.f32 %v1948, %v2140
      %v2205 = vmul.f32 %v1949, %v2141
      %v2206 = vmul.f32 %v1950, %v2142
      %v2207 = vmul.f32 %v1951, %v2143
      %v2208 = vmul.f32 %v1952, %v2144
      %v2209 = vmul.f32 %v1953, %v2145
      %v2210 = vmul.f32 %v1954, %v2146
      %v2211 = vmul.f32 %v1955, %v2147
      %v2212 = vmul.f32 %v1956, %v2148
      %v2213 = vmul.f32 %v1957, %v2149
      %v2214 = vmul.f32 %v1958, %v2150
      %v2215 = vmul.f32 %v1959, %v2151
      %v2216 = vmul.f32 %v1960, %v2152
      %v2217 = vmul.f32 %v1961, %v2153
      %v2218 = vmul.f32 %v1962, %v2154
      %v2219 = vmul.f32 %v1963, %v2155
      %v2220 = vmul.f32 %v1964, %v2156
      %v2221 = vmul.f32 %v1965, %v2157
      %v2222 = vmul.f32 %v1966, %v2158
      %v2223 = vmul.f32 %v1967, %v2159
      %v2224 = vmul.f32 %v1968, %v2160
      %v2225 = vmul.f32 %v1969, %v2161
      %v2226 = vmul.f32 %v1970, %v2162
      %v2227 = vmul.f32 %v1971, %v2163
      %v2228 = vmul.f32 %v1972, %v2164
      %v2229 = vmul.f32 %v1973, %v2165
      %v2230 = vmul.f32 %v1974, %v2166
      %v2231 = vld [vmem:[%s5] sm:$0xff]
      %v2232 = vld [vmem:[%s5 + $0x8] sm:$0xff]
      %v2233 = vld [vmem:[%s5 + $0x10] sm:$0xff]
      %v2234 = vld [vmem:[%s5 + $0x18] sm:$0xff]
      %v2235 = vld [vmem:[%s5 + $0x20] sm:$0xff]
      %v2236 = vld [vmem:[%s5 + $0x28] sm:$0xff]
      %v2237 = vld [vmem:[%s5 + $0x30] sm:$0xff]
      %v2238 = vld [vmem:[%s5 + $0x38] sm:$0xff]
      %v2239 = vld [vmem:[%s5 + $0x40] sm:$0xff]
      %v2240 = vld [vmem:[%s5 + $0x48] sm:$0xff]
      %v2241 = vld [vmem:[%s5 + $0x50] sm:$0xff]
      %v2242 = vld [vmem:[%s5 + $0x58] sm:$0xff]
      %v2243 = vld [vmem:[%s5 + $0x60] sm:$0xff]
      %v2244 = vld [vmem:[%s5 + $0x68] sm:$0xff]
      %v2245 = vld [vmem:[%s5 + $0x70] sm:$0xff]
      %v2246 = vld [vmem:[%s5 + $0x78] sm:$0xff]
      %v2248 = vlaneseq
      %v2249 = vshrl.u32 %v2248, 7
      %v2250 = vsub.s32 0, %v2249
      %v2251 = vrot.slane %v349, %v2250
      %2253 = vmatprep.subr.mxu0 0.0
      %2254 = vmatpush1.msra.mxu0 %v2246
      %2255 = vmatprep.subr.mxu0 0.0
      %2256 = vmatpush1.msra.mxu0 %v2245
      %2257 = vmatprep.subr.mxu0 0.0
      %2258 = vmatpush1.msra.mxu0 %v2244
      %2259 = vmatprep.subr.mxu0 0.0
      %2260 = vmatpush1.msra.mxu0 %v2243
      %2261 = vmatprep.subr.mxu0 0.0
      %2262 = vmatpush1.msra.mxu0 %v2242
      %2263 = vmatprep.subr.mxu0 0.0
      %2264 = vmatpush1.msra.mxu0 %v2241
      %2265 = vmatprep.subr.mxu0 0.0
      %2266 = vmatpush1.msra.mxu0 %v2240
      %2267 = vmatprep.subr.mxu0 0.0
      %2268 = vmatpush1.msra.mxu0 %v2239
      %2269 = vmatprep.subr.mxu0 0.0
      %2270 = vmatpush1.msra.mxu0 %v2238
      %2271 = vmatprep.subr.mxu0 0.0
      %2272 = vmatpush1.msra.mxu0 %v2237
      %2273 = vmatprep.subr.mxu0 0.0
      %2274 = vmatpush1.msra.mxu0 %v2236
      %2275 = vmatprep.subr.mxu0 0.0
      %2276 = vmatpush1.msra.mxu0 %v2235
      %2277 = vmatprep.subr.mxu0 0.0
      %2278 = vmatpush1.msra.mxu0 %v2234
      %2279 = vmatprep.subr.mxu0 0.0
      %2280 = vmatpush1.msra.mxu0 %v2233
      %2281 = vmatprep.subr.mxu0 0.0
      %2282 = vmatpush1.msra.mxu0 %v2232
      %2283 = vmatprep.subr.mxu0 0.0
      %2284 = vmatpush1.msra.mxu0 %v2231
      %2285 = vmatprep.subr.mxu0 0.0
      %2286 = vmatpush2.msra.mxu0 0.0
      %2287 = vmatprep.subr.mxu0 0.0
      %2288 = vmatpush2.msra.mxu0 0.0
      %2289 = vmatprep.subr.mxu0 0.0
      %2290 = vmatpush2.msra.mxu0 0.0
      %2291 = vmatprep.subr.mxu0 0.0
      %2292 = vmatpush2.msra.mxu0 0.0
      %2293 = vmatprep.subr.mxu0 0.0
      %2294 = vmatpush2.msra.mxu0 0.0
      %2295 = vmatprep.subr.mxu0 0.0
      %2296 = vmatpush2.msra.mxu0 0.0
      %2297 = vmatprep.subr.mxu0 0.0
      %2298 = vmatpush2.msra.mxu0 0.0
      %2299 = vmatprep.subr.mxu0 0.0
      %2300 = vmatpush2.msra.mxu0 0.0
      %2301 = vmatprep.subr.mxu0 0.0
      %2302 = vmatpush2.msra.mxu0 0.0
      %2303 = vmatprep.subr.mxu0 0.0
      %2304 = vmatpush2.msra.mxu0 0.0
      %2305 = vmatprep.subr.mxu0 0.0
      %2306 = vmatpush2.msra.mxu0 0.0
      %2307 = vmatprep.subr.mxu0 0.0
      %2308 = vmatpush2.msra.mxu0 0.0
      %2309 = vmatprep.subr.mxu0 0.0
      %2310 = vmatpush2.msra.mxu0 0.0
      %2311 = vmatprep.subr.mxu0 0.0
      %2312 = vmatpush2.msra.mxu0 0.0
      %2313 = vmatprep.subr.mxu0 0.0
      %2314 = vmatpush2.msra.mxu0 0.0
      %2315 = vmatprep.subr.mxu0 0.0
      %2316 = vmatpush2.msra.mxu0 0.0
      %2317 = vmatprep.mubr.f32.mxu0 0.0
      %2318 = vmatmul.mubr.f32.gmra.mxu0 %v2167
      %v2319 = vpop.f32.mrf.mxu0
      %v2320 = vadd.f32 %v2251, %v2319
      %v2321 = vpop.f32.mrf.mxu0
      %2322 = vmatprep.mubr.f32.mxu0 0.0
      %2323 = vmatmul.mubr.f32.gmra.mxu0 %v2168
      %v2324 = vpop.f32.mrf.mxu0
      %v2325 = vadd.f32 %v2251, %v2324
      %v2326 = vpop.f32.mrf.mxu0
      %2327 = vmatprep.mubr.f32.mxu0 0.0
      %2328 = vmatmul.mubr.f32.gmra.mxu0 %v2169
      %v2329 = vpop.f32.mrf.mxu0
      %v2330 = vadd.f32 %v2251, %v2329
      %v2331 = vpop.f32.mrf.mxu0
      %2332 = vmatprep.mubr.f32.mxu0 0.0
      %2333 = vmatmul.mubr.f32.gmra.mxu0 %v2170
      %v2334 = vpop.f32.mrf.mxu0
      %v2335 = vadd.f32 %v2251, %v2334
      %v2336 = vpop.f32.mrf.mxu0
      %2337 = vmatprep.mubr.f32.mxu0 0.0
      %2338 = vmatmul.mubr.f32.gmra.mxu0 %v2171
      %v2339 = vpop.f32.mrf.mxu0
      %v2340 = vadd.f32 %v2251, %v2339
      %v2341 = vpop.f32.mrf.mxu0
      %2342 = vmatprep.mubr.f32.mxu0 0.0
      %2343 = vmatmul.mubr.f32.gmra.mxu0 %v2172
      %v2344 = vpop.f32.mrf.mxu0
      %v2345 = vadd.f32 %v2251, %v2344
      %v2346 = vpop.f32.mrf.mxu0
      %2347 = vmatprep.mubr.f32.mxu0 0.0
      %2348 = vmatmul.mubr.f32.gmra.mxu0 %v2173
      %v2349 = vpop.f32.mrf.mxu0
      %v2350 = vadd.f32 %v2251, %v2349
      %v2351 = vpop.f32.mrf.mxu0
      %2352 = vmatprep.mubr.f32.mxu0 0.0
      %2353 = vmatmul.mubr.f32.gmra.mxu0 %v2174
      %v2354 = vpop.f32.mrf.mxu0
      %v2355 = vadd.f32 %v2251, %v2354
      %v2356 = vpop.f32.mrf.mxu0
      %2357 = vmatprep.mubr.f32.mxu0 0.0
      %2358 = vmatmul.mubr.f32.gmra.mxu0 %v2175
      %v2359 = vpop.f32.mrf.mxu0
      %v2360 = vadd.f32 %v2251, %v2359
      %v2361 = vpop.f32.mrf.mxu0
      %2362 = vmatprep.mubr.f32.mxu0 0.0
      %2363 = vmatmul.mubr.f32.gmra.mxu0 %v2176
      %v2364 = vpop.f32.mrf.mxu0
      %v2365 = vadd.f32 %v2251, %v2364
      %v2366 = vpop.f32.mrf.mxu0
      %2367 = vmatprep.mubr.f32.mxu0 0.0
      %2368 = vmatmul.mubr.f32.gmra.mxu0 %v2177
      %v2369 = vpop.f32.mrf.mxu0
      %v2370 = vadd.f32 %v2251, %v2369
      %v2371 = vpop.f32.mrf.mxu0
      %2372 = vmatprep.mubr.f32.mxu0 0.0
      %2373 = vmatmul.mubr.f32.gmra.mxu0 %v2178
      %v2374 = vpop.f32.mrf.mxu0
      %v2375 = vadd.f32 %v2251, %v2374
      %v2376 = vpop.f32.mrf.mxu0
      %2377 = vmatprep.mubr.f32.mxu0 0.0
      %2378 = vmatmul.mubr.f32.gmra.mxu0 %v2179
      %v2379 = vpop.f32.mrf.mxu0
      %v2380 = vadd.f32 %v2251, %v2379
      %v2381 = vpop.f32.mrf.mxu0
      %2382 = vmatprep.mubr.f32.mxu0 0.0
      %2383 = vmatmul.mubr.f32.gmra.mxu0 %v2180
      %v2384 = vpop.f32.mrf.mxu0
      %v2385 = vadd.f32 %v2251, %v2384
      %v2386 = vpop.f32.mrf.mxu0
      %2387 = vmatprep.mubr.f32.mxu0 0.0
      %2388 = vmatmul.mubr.f32.gmra.mxu0 %v2181
      %v2389 = vpop.f32.mrf.mxu0
      %v2390 = vadd.f32 %v2251, %v2389
      %v2391 = vpop.f32.mrf.mxu0
      %2392 = vmatprep.mubr.f32.mxu0 0.0
      %2393 = vmatmul.mubr.f32.gmra.mxu0 %v2182
      %v2394 = vpop.f32.mrf.mxu0
      %v2395 = vadd.f32 %v2251, %v2394
      %v2396 = vpop.f32.mrf.mxu0
      %2397 = vmatprep.mubr.f32.mxu0 0.0
      %2398 = vmatmul.mubr.f32.gmra.mxu0 %v2183
      %v2399 = vpop.f32.mrf.mxu0
      %v2400 = vadd.f32 %v2251, %v2399
      %v2401 = vpop.f32.mrf.mxu0
      %2402 = vmatprep.mubr.f32.mxu0 0.0
      %2403 = vmatmul.mubr.f32.gmra.mxu0 %v2184
      %v2404 = vpop.f32.mrf.mxu0
      %v2405 = vadd.f32 %v2251, %v2404
      %v2406 = vpop.f32.mrf.mxu0
      %2407 = vmatprep.mubr.f32.mxu0 0.0
      %2408 = vmatmul.mubr.f32.gmra.mxu0 %v2185
      %v2409 = vpop.f32.mrf.mxu0
      %v2410 = vadd.f32 %v2251, %v2409
      %v2411 = vpop.f32.mrf.mxu0
      %2412 = vmatprep.mubr.f32.mxu0 0.0
      %2413 = vmatmul.mubr.f32.gmra.mxu0 %v2186
      %v2414 = vpop.f32.mrf.mxu0
      %v2415 = vadd.f32 %v2251, %v2414
      %v2416 = vpop.f32.mrf.mxu0
      %2417 = vmatprep.mubr.f32.mxu0 0.0
      %2418 = vmatmul.mubr.f32.gmra.mxu0 %v2187
      %v2419 = vpop.f32.mrf.mxu0
      %v2420 = vadd.f32 %v2251, %v2419
      %v2421 = vpop.f32.mrf.mxu0
      %2422 = vmatprep.mubr.f32.mxu0 0.0
      %2423 = vmatmul.mubr.f32.gmra.mxu0 %v2188
      %v2424 = vpop.f32.mrf.mxu0
      %v2425 = vadd.f32 %v2251, %v2424
      %v2426 = vpop.f32.mrf.mxu0
      %2427 = vmatprep.mubr.f32.mxu0 0.0
      %2428 = vmatmul.mubr.f32.gmra.mxu0 %v2189
      %v2429 = vpop.f32.mrf.mxu0
      %v2430 = vadd.f32 %v2251, %v2429
      %v2431 = vpop.f32.mrf.mxu0
      %2432 = vmatprep.mubr.f32.mxu0 0.0
      %2433 = vmatmul.mubr.f32.gmra.mxu0 %v2190
      %v2434 = vpop.f32.mrf.mxu0
      %v2435 = vadd.f32 %v2251, %v2434
      %v2436 = vpop.f32.mrf.mxu0
      %2437 = vmatprep.mubr.f32.mxu0 0.0
      %2438 = vmatmul.mubr.f32.gmra.mxu0 %v2191
      %v2439 = vpop.f32.mrf.mxu0
      %v2440 = vadd.f32 %v2251, %v2439
      %v2441 = vpop.f32.mrf.mxu0
      %2442 = vmatprep.mubr.f32.mxu0 0.0
      %2443 = vmatmul.mubr.f32.gmra.mxu0 %v2192
      %v2444 = vpop.f32.mrf.mxu0
      %v2445 = vadd.f32 %v2251, %v2444
      %v2446 = vpop.f32.mrf.mxu0
      %2447 = vmatprep.mubr.f32.mxu0 0.0
      %2448 = vmatmul.mubr.f32.gmra.mxu0 %v2193
      %v2449 = vpop.f32.mrf.mxu0
      %v2450 = vadd.f32 %v2251, %v2449
      %v2451 = vpop.f32.mrf.mxu0
      %2452 = vmatprep.mubr.f32.mxu0 0.0
      %2453 = vmatmul.mubr.f32.gmra.mxu0 %v2194
      %v2454 = vpop.f32.mrf.mxu0
      %v2455 = vadd.f32 %v2251, %v2454
      %v2456 = vpop.f32.mrf.mxu0
      %2457 = vmatprep.mubr.f32.mxu0 0.0
      %2458 = vmatmul.mubr.f32.gmra.mxu0 %v2195
      %v2459 = vpop.f32.mrf.mxu0
      %v2460 = vadd.f32 %v2251, %v2459
      %v2461 = vpop.f32.mrf.mxu0
      %2462 = vmatprep.mubr.f32.mxu0 0.0
      %2463 = vmatmul.mubr.f32.gmra.mxu0 %v2196
      %v2464 = vpop.f32.mrf.mxu0
      %v2465 = vadd.f32 %v2251, %v2464
      %v2466 = vpop.f32.mrf.mxu0
      %2467 = vmatprep.mubr.f32.mxu0 0.0
      %2468 = vmatmul.mubr.f32.gmra.mxu0 %v2197
      %v2469 = vpop.f32.mrf.mxu0
      %v2470 = vadd.f32 %v2251, %v2469
      %v2471 = vpop.f32.mrf.mxu0
      %2472 = vmatprep.mubr.f32.mxu0 0.0
      %2473 = vmatmul.mubr.f32.gmra.mxu0 %v2198
      %v2474 = vpop.f32.mrf.mxu0
      %v2475 = vadd.f32 %v2251, %v2474
      %v2476 = vpop.f32.mrf.mxu0
      %2477 = vmatprep.mubr.f32.mxu0 0.0
      %2478 = vmatmul.mubr.f32.gmra.mxu0 %v2199
      %v2479 = vpop.f32.mrf.mxu0
      %v2480 = vadd.f32 %v2251, %v2479
      %v2481 = vpop.f32.mrf.mxu0
      %2482 = vmatprep.mubr.f32.mxu0 0.0
      %2483 = vmatmul.mubr.f32.gmra.mxu0 %v2200
      %v2484 = vpop.f32.mrf.mxu0
      %v2485 = vadd.f32 %v2251, %v2484
      %v2486 = vpop.f32.mrf.mxu0
      %2487 = vmatprep.mubr.f32.mxu0 0.0
      %2488 = vmatmul.mubr.f32.gmra.mxu0 %v2201
      %v2489 = vpop.f32.mrf.mxu0
      %v2490 = vadd.f32 %v2251, %v2489
      %v2491 = vpop.f32.mrf.mxu0
      %2492 = vmatprep.mubr.f32.mxu0 0.0
      %2493 = vmatmul.mubr.f32.gmra.mxu0 %v2202
      %v2494 = vpop.f32.mrf.mxu0
      %v2495 = vadd.f32 %v2251, %v2494
      %v2496 = vpop.f32.mrf.mxu0
      %2497 = vmatprep.mubr.f32.mxu0 0.0
      %2498 = vmatmul.mubr.f32.gmra.mxu0 %v2203
      %v2499 = vpop.f32.mrf.mxu0
      %v2500 = vadd.f32 %v2251, %v2499
      %v2501 = vpop.f32.mrf.mxu0
      %2502 = vmatprep.mubr.f32.mxu0 0.0
      %2503 = vmatmul.mubr.f32.gmra.mxu0 %v2204
      %v2504 = vpop.f32.mrf.mxu0
      %v2505 = vadd.f32 %v2251, %v2504
      %v2506 = vpop.f32.mrf.mxu0
      %2507 = vmatprep.mubr.f32.mxu0 0.0
      %2508 = vmatmul.mubr.f32.gmra.mxu0 %v2205
      %v2509 = vpop.f32.mrf.mxu0
      %v2510 = vadd.f32 %v2251, %v2509
      %v2511 = vpop.f32.mrf.mxu0
      %2512 = vmatprep.mubr.f32.mxu0 0.0
      %2513 = vmatmul.mubr.f32.gmra.mxu0 %v2206
      %v2514 = vpop.f32.mrf.mxu0
      %v2515 = vadd.f32 %v2251, %v2514
      %v2516 = vpop.f32.mrf.mxu0
      %2517 = vmatprep.mubr.f32.mxu0 0.0
      %2518 = vmatmul.mubr.f32.gmra.mxu0 %v2207
      %v2519 = vpop.f32.mrf.mxu0
      %v2520 = vadd.f32 %v2251, %v2519
      %v2521 = vpop.f32.mrf.mxu0
      %2522 = vmatprep.mubr.f32.mxu0 0.0
      %2523 = vmatmul.mubr.f32.gmra.mxu0 %v2208
      %v2524 = vpop.f32.mrf.mxu0
      %v2525 = vadd.f32 %v2251, %v2524
      %v2526 = vpop.f32.mrf.mxu0
      %2527 = vmatprep.mubr.f32.mxu0 0.0
      %2528 = vmatmul.mubr.f32.gmra.mxu0 %v2209
      %v2529 = vpop.f32.mrf.mxu0
      %v2530 = vadd.f32 %v2251, %v2529
      %v2531 = vpop.f32.mrf.mxu0
      %2532 = vmatprep.mubr.f32.mxu0 0.0
      %2533 = vmatmul.mubr.f32.gmra.mxu0 %v2210
      %v2534 = vpop.f32.mrf.mxu0
      %v2535 = vadd.f32 %v2251, %v2534
      %v2536 = vpop.f32.mrf.mxu0
      %2537 = vmatprep.mubr.f32.mxu0 0.0
      %2538 = vmatmul.mubr.f32.gmra.mxu0 %v2211
      %v2539 = vpop.f32.mrf.mxu0
      %v2540 = vadd.f32 %v2251, %v2539
      %v2541 = vpop.f32.mrf.mxu0
      %2542 = vmatprep.mubr.f32.mxu0 0.0
      %2543 = vmatmul.mubr.f32.gmra.mxu0 %v2212
      %v2544 = vpop.f32.mrf.mxu0
      %v2545 = vadd.f32 %v2251, %v2544
      %v2546 = vpop.f32.mrf.mxu0
      %2547 = vmatprep.mubr.f32.mxu0 0.0
      %2548 = vmatmul.mubr.f32.gmra.mxu0 %v2213
      %v2549 = vpop.f32.mrf.mxu0
      %v2550 = vadd.f32 %v2251, %v2549
      %v2551 = vpop.f32.mrf.mxu0
      %2552 = vmatprep.mubr.f32.mxu0 0.0
      %2553 = vmatmul.mubr.f32.gmra.mxu0 %v2214
      %v2554 = vpop.f32.mrf.mxu0
      %v2555 = vadd.f32 %v2251, %v2554
      %v2556 = vpop.f32.mrf.mxu0
      %2557 = vmatprep.mubr.f32.mxu0 0.0
      %2558 = vmatmul.mubr.f32.gmra.mxu0 %v2215
      %v2559 = vpop.f32.mrf.mxu0
      %v2560 = vadd.f32 %v2251, %v2559
      %v2561 = vpop.f32.mrf.mxu0
      %2562 = vmatprep.mubr.f32.mxu0 0.0
      %2563 = vmatmul.mubr.f32.gmra.mxu0 %v2216
      %v2564 = vpop.f32.mrf.mxu0
      %v2565 = vadd.f32 %v2251, %v2564
      %v2566 = vpop.f32.mrf.mxu0
      %2567 = vmatprep.mubr.f32.mxu0 0.0
      %2568 = vmatmul.mubr.f32.gmra.mxu0 %v2217
      %v2569 = vpop.f32.mrf.mxu0
      %v2570 = vadd.f32 %v2251, %v2569
      %v2571 = vpop.f32.mrf.mxu0
      %2572 = vmatprep.mubr.f32.mxu0 0.0
      %2573 = vmatmul.mubr.f32.gmra.mxu0 %v2218
      %v2574 = vpop.f32.mrf.mxu0
      %v2575 = vadd.f32 %v2251, %v2574
      %v2576 = vpop.f32.mrf.mxu0
      %2577 = vmatprep.mubr.f32.mxu0 0.0
      %2578 = vmatmul.mubr.f32.gmra.mxu0 %v2219
      %v2579 = vpop.f32.mrf.mxu0
      %v2580 = vadd.f32 %v2251, %v2579
      %v2581 = vpop.f32.mrf.mxu0
      %2582 = vmatprep.mubr.f32.mxu0 0.0
      %2583 = vmatmul.mubr.f32.gmra.mxu0 %v2220
      %v2584 = vpop.f32.mrf.mxu0
      %v2585 = vadd.f32 %v2251, %v2584
      %v2586 = vpop.f32.mrf.mxu0
      %2587 = vmatprep.mubr.f32.mxu0 0.0
      %2588 = vmatmul.mubr.f32.gmra.mxu0 %v2221
      %v2589 = vpop.f32.mrf.mxu0
      %v2590 = vadd.f32 %v2251, %v2589
      %v2591 = vpop.f32.mrf.mxu0
      %2592 = vmatprep.mubr.f32.mxu0 0.0
      %2593 = vmatmul.mubr.f32.gmra.mxu0 %v2222
      %v2594 = vpop.f32.mrf.mxu0
      %v2595 = vadd.f32 %v2251, %v2594
      %v2596 = vpop.f32.mrf.mxu0
      %2597 = vmatprep.mubr.f32.mxu0 0.0
      %2598 = vmatmul.mubr.f32.gmra.mxu0 %v2223
      %v2599 = vpop.f32.mrf.mxu0
      %v2600 = vadd.f32 %v2251, %v2599
      %v2601 = vpop.f32.mrf.mxu0
      %2602 = vmatprep.mubr.f32.mxu0 0.0
      %2603 = vmatmul.mubr.f32.gmra.mxu0 %v2224
      %v2604 = vpop.f32.mrf.mxu0
      %v2605 = vadd.f32 %v2251, %v2604
      %v2606 = vpop.f32.mrf.mxu0
      %2607 = vmatprep.mubr.f32.mxu0 0.0
      %2608 = vmatmul.mubr.f32.gmra.mxu0 %v2225
      %v2609 = vpop.f32.mrf.mxu0
      %v2610 = vadd.f32 %v2251, %v2609
      %v2611 = vpop.f32.mrf.mxu0
      %2612 = vmatprep.mubr.f32.mxu0 0.0
      %2613 = vmatmul.mubr.f32.gmra.mxu0 %v2226
      %v2614 = vpop.f32.mrf.mxu0
      %v2615 = vadd.f32 %v2251, %v2614
      %v2616 = vpop.f32.mrf.mxu0
      %2617 = vmatprep.mubr.f32.mxu0 0.0
      %2618 = vmatmul.mubr.f32.gmra.mxu0 %v2227
      %v2619 = vpop.f32.mrf.mxu0
      %v2620 = vadd.f32 %v2251, %v2619
      %v2621 = vpop.f32.mrf.mxu0
      %2622 = vmatprep.mubr.f32.mxu0 0.0
      %2623 = vmatmul.mubr.f32.gmra.mxu0 %v2228
      %v2624 = vpop.f32.mrf.mxu0
      %v2625 = vadd.f32 %v2251, %v2624
      %v2626 = vpop.f32.mrf.mxu0
      %2627 = vmatprep.mubr.f32.mxu0 0.0
      %2628 = vmatmul.mubr.f32.gmra.mxu0 %v2229
      %v2629 = vpop.f32.mrf.mxu0
      %v2630 = vadd.f32 %v2251, %v2629
      %v2631 = vpop.f32.mrf.mxu0
      %2632 = vmatprep.mubr.f32.mxu0 0.0
      %2633 = vmatmul.mubr.f32.gmra.mxu0 %v2230
      %v2634 = vpop.f32.mrf.mxu0
      %v2635 = vadd.f32 %v2251, %v2634
      %v2636 = vpop.f32.mrf.mxu0
      %2637 = vdwg.mxu0
      %v2638 = vadd.f32 %v2320, %v282
      %v2639 = vadd.f32 %v2325, %v283
      %v2640 = vadd.f32 %v2330, %v284
      %v2641 = vadd.f32 %v2335, %v285
      %v2642 = vadd.f32 %v2340, %v286
      %v2643 = vadd.f32 %v2345, %v287
      %v2644 = vadd.f32 %v2350, %v288
      %v2645 = vadd.f32 %v2355, %v289
      %v2646 = vadd.f32 %v2360, %v290
      %v2647 = vadd.f32 %v2365, %v291
      %v2648 = vadd.f32 %v2370, %v292
      %v2649 = vadd.f32 %v2375, %v293
      %v2650 = vadd.f32 %v2380, %v294
      %v2651 = vadd.f32 %v2385, %v295
      %v2652 = vadd.f32 %v2390, %v296
      %v2653 = vadd.f32 %v2395, %v297
      %v2654 = vadd.f32 %v2400, %v298
      %v2655 = vadd.f32 %v2405, %v299
      %v2656 = vadd.f32 %v2410, %v300
      %v2657 = vadd.f32 %v2415, %v301
      %v2658 = vadd.f32 %v2420, %v302
      %v2659 = vadd.f32 %v2425, %v303
      %v2660 = vadd.f32 %v2430, %v304
      %v2661 = vadd.f32 %v2435, %v305
      %v2662 = vadd.f32 %v2440, %v306
      %v2663 = vadd.f32 %v2445, %v307
      %v2664 = vadd.f32 %v2450, %v308
      %v2665 = vadd.f32 %v2455, %v309
      %v2666 = vadd.f32 %v2460, %v310
      %v2667 = vadd.f32 %v2465, %v311
      %v2668 = vadd.f32 %v2470, %v312
      %v2669 = vadd.f32 %v2475, %v313
      %v2670 = vadd.f32 %v2480, %v314
      %v2671 = vadd.f32 %v2485, %v315
      %v2672 = vadd.f32 %v2490, %v316
      %v2673 = vadd.f32 %v2495, %v317
      %v2674 = vadd.f32 %v2500, %v318
      %v2675 = vadd.f32 %v2505, %v319
      %v2676 = vadd.f32 %v2510, %v320
      %v2677 = vadd.f32 %v2515, %v321
      %v2678 = vadd.f32 %v2520, %v322
      %v2679 = vadd.f32 %v2525, %v323
      %v2680 = vadd.f32 %v2530, %v324
      %v2681 = vadd.f32 %v2535, %v325
      %v2682 = vadd.f32 %v2540, %v326
      %v2683 = vadd.f32 %v2545, %v327
      %v2684 = vadd.f32 %v2550, %v328
      %v2685 = vadd.f32 %v2555, %v329
      %v2686 = vadd.f32 %v2560, %v330
      %v2687 = vadd.f32 %v2565, %v331
      %v2688 = vadd.f32 %v2570, %v332
      %v2689 = vadd.f32 %v2575, %v333
      %v2690 = vadd.f32 %v2580, %v334
      %v2691 = vadd.f32 %v2585, %v335
      %v2692 = vadd.f32 %v2590, %v336
      %v2693 = vadd.f32 %v2595, %v337
      %v2694 = vadd.f32 %v2600, %v338
      %v2695 = vadd.f32 %v2605, %v339
      %v2696 = vadd.f32 %v2610, %v340
      %v2697 = vadd.f32 %v2615, %v341
      %v2698 = vadd.f32 %v2620, %v342
      %v2699 = vadd.f32 %v2625, %v343
      %v2700 = vadd.f32 %v2630, %v344
      %v2701 = vadd.f32 %v2635, %v345
      %2702 = vst.msk [vmem:[%s280] sm:$0xff] %vm350, %v2638
      %2703 = vst.msk [vmem:[%s280 + $0x8] sm:$0xff] %vm350, %v2639
      %2704 = vst.msk [vmem:[%s280 + $0x10] sm:$0xff] %vm350, %v2640
      %2705 = vst.msk [vmem:[%s280 + $0x18] sm:$0xff] %vm350, %v2641
      %2706 = vst.msk [vmem:[%s280 + $0x20] sm:$0xff] %vm350, %v2642
      %2707 = vst.msk [vmem:[%s280 + $0x28] sm:$0xff] %vm350, %v2643
      %2708 = vst.msk [vmem:[%s280 + $0x30] sm:$0xff] %vm350, %v2644
      %2709 = vst.msk [vmem:[%s280 + $0x38] sm:$0xff] %vm350, %v2645
      %2710 = vst.msk [vmem:[%s280 + $0x40] sm:$0xff] %vm350, %v2646
      %2711 = vst.msk [vmem:[%s280 + $0x48] sm:$0xff] %vm350, %v2647
      %2712 = vst.msk [vmem:[%s280 + $0x50] sm:$0xff] %vm350, %v2648
      %2713 = vst.msk [vmem:[%s280 + $0x58] sm:$0xff] %vm350, %v2649
      %2714 = vst.msk [vmem:[%s280 + $0x60] sm:$0xff] %vm350, %v2650
      %2715 = vst.msk [vmem:[%s280 + $0x68] sm:$0xff] %vm350, %v2651
      %2716 = vst.msk [vmem:[%s280 + $0x70] sm:$0xff] %vm350, %v2652
      %2717 = vst.msk [vmem:[%s280 + $0x78] sm:$0xff] %vm350, %v2653
      %2718 = vst.msk [vmem:[%s280 + $0x80] sm:$0xff] %vm350, %v2654
      %2719 = vst.msk [vmem:[%s280 + $0x88] sm:$0xff] %vm350, %v2655
      %2720 = vst.msk [vmem:[%s280 + $0x90] sm:$0xff] %vm350, %v2656
      %2721 = vst.msk [vmem:[%s280 + $0x98] sm:$0xff] %vm350, %v2657
      %2722 = vst.msk [vmem:[%s280 + $0xa0] sm:$0xff] %vm350, %v2658
      %2723 = vst.msk [vmem:[%s280 + $0xa8] sm:$0xff] %vm350, %v2659
      %2724 = vst.msk [vmem:[%s280 + $0xb0] sm:$0xff] %vm350, %v2660
      %2725 = vst.msk [vmem:[%s280 + $0xb8] sm:$0xff] %vm350, %v2661
      %2726 = vst.msk [vmem:[%s280 + $0xc0] sm:$0xff] %vm350, %v2662
      %2727 = vst.msk [vmem:[%s280 + $0xc8] sm:$0xff] %vm350, %v2663
      %2728 = vst.msk [vmem:[%s280 + $0xd0] sm:$0xff] %vm350, %v2664
      %2729 = vst.msk [vmem:[%s280 + $0xd8] sm:$0xff] %vm350, %v2665
      %2730 = vst.msk [vmem:[%s280 + $0xe0] sm:$0xff] %vm350, %v2666
      %2731 = vst.msk [vmem:[%s280 + $0xe8] sm:$0xff] %vm350, %v2667
      %2732 = vst.msk [vmem:[%s280 + $0xf0] sm:$0xff] %vm350, %v2668
      %2733 = vst.msk [vmem:[%s280 + $0xf8] sm:$0xff] %vm350, %v2669
      %2734 = vst.msk [vmem:[%s280 + $0x100] sm:$0xff] %vm350, %v2670
      %2735 = vst.msk [vmem:[%s280 + $0x108] sm:$0xff] %vm350, %v2671
      %2736 = vst.msk [vmem:[%s280 + $0x110] sm:$0xff] %vm350, %v2672
      %2737 = vst.msk [vmem:[%s280 + $0x118] sm:$0xff] %vm350, %v2673
      %2738 = vst.msk [vmem:[%s280 + $0x120] sm:$0xff] %vm350, %v2674
      %2739 = vst.msk [vmem:[%s280 + $0x128] sm:$0xff] %vm350, %v2675
      %2740 = vst.msk [vmem:[%s280 + $0x130] sm:$0xff] %vm350, %v2676
      %2741 = vst.msk [vmem:[%s280 + $0x138] sm:$0xff] %vm350, %v2677
      %2742 = vst.msk [vmem:[%s280 + $0x140] sm:$0xff] %vm350, %v2678
      %2743 = vst.msk [vmem:[%s280 + $0x148] sm:$0xff] %vm350, %v2679
      %2744 = vst.msk [vmem:[%s280 + $0x150] sm:$0xff] %vm350, %v2680
      %2745 = vst.msk [vmem:[%s280 + $0x158] sm:$0xff] %vm350, %v2681
      %2746 = vst.msk [vmem:[%s280 + $0x160] sm:$0xff] %vm350, %v2682
      %2747 = vst.msk [vmem:[%s280 + $0x168] sm:$0xff] %vm350, %v2683
      %2748 = vst.msk [vmem:[%s280 + $0x170] sm:$0xff] %vm350, %v2684
      %2749 = vst.msk [vmem:[%s280 + $0x178] sm:$0xff] %vm350, %v2685
      %2750 = vst.msk [vmem:[%s280 + $0x180] sm:$0xff] %vm350, %v2686
      %2751 = vst.msk [vmem:[%s280 + $0x188] sm:$0xff] %vm350, %v2687
      %2752 = vst.msk [vmem:[%s280 + $0x190] sm:$0xff] %vm350, %v2688
      %2753 = vst.msk [vmem:[%s280 + $0x198] sm:$0xff] %vm350, %v2689
      %2754 = vst.msk [vmem:[%s280 + $0x1a0] sm:$0xff] %vm350, %v2690
      %2755 = vst.msk [vmem:[%s280 + $0x1a8] sm:$0xff] %vm350, %v2691
      %2756 = vst.msk [vmem:[%s280 + $0x1b0] sm:$0xff] %vm350, %v2692
      %2757 = vst.msk [vmem:[%s280 + $0x1b8] sm:$0xff] %vm350, %v2693
      %2758 = vst.msk [vmem:[%s280 + $0x1c0] sm:$0xff] %vm350, %v2694
      %2759 = vst.msk [vmem:[%s280 + $0x1c8] sm:$0xff] %vm350, %v2695
      %2760 = vst.msk [vmem:[%s280 + $0x1d0] sm:$0xff] %vm350, %v2696
      %2761 = vst.msk [vmem:[%s280 + $0x1d8] sm:$0xff] %vm350, %v2697
      %2762 = vst.msk [vmem:[%s280 + $0x1e0] sm:$0xff] %vm350, %v2698
      %2763 = vst.msk [vmem:[%s280 + $0x1e8] sm:$0xff] %vm350, %v2699
      %2764 = vst.msk [vmem:[%s280 + $0x1f0] sm:$0xff] %vm350, %v2700
      %2765 = vst.msk [vmem:[%s280 + $0x1f8] sm:$0xff] %vm350, %v2701
      %s2766 = smul.u32 64, %s18
      %p2767 = scmp.lt.s32.totalorder %s2766, 255
      %s2768 = scalar_select %p2767, %s2766, 255
      %s2769 = smul.addr %s2768, 8
      %s2770 = scalar_lea.vmem %s7, %s2769
      // Predicated region
      $region49: #{tpu_custom_call.1} parent=47 // pred_check
        %p2771 = pneg %p188
      $region50: #{tpu_custom_call.1} parent=47 // pred_check_branch
        %2773 = sbr.rel (%p2771) target = $region52
      $region51: #{tpu_custom_call.1} parent=47 // pred_region
        %s2774 = smul.u32 64, %s18
      $region52: #{tpu_custom_call.1} parent=47 // pred_fallthru
        _
    $region48: #{tpu_custom_call.1} parent=5 // pred_fallthru
      _
    %p2775 = scmp.le.s32.totalorder 2, %s13
    // Predicated region
    $region53: #{tpu_custom_call.1} parent=5 // pred_check
      %p2776 = pneg %p2775
    $region54: #{tpu_custom_call.1} parent=5 // pred_check_branch
      %2778 = sbr.rel (%p2776) target = $region56
    $region55: #{tpu_custom_call.1} parent=5 // pred_region
      %s2779 = ssub.s32 %s13, 2
      // Predicated region
      $region57: #{tpu_custom_call.1} parent=55 // pred_check
        %p2780 = pneg %p194
      $region58: #{tpu_custom_call.1} parent=55 // pred_check_branch
        %2782 = sbr.rel (%p2780) target = $region60
      $region59: #{tpu_custom_call.1} parent=55 // pred_region
        %s2783 = smul.u32 64, %s19
        %p2784 = scmp.lt.s32.totalorder %s2783, 255
        %s2785 = scalar_select %p2784, %s2783, 255
        %s2786 = smul.addr %s2785, 8
        %s2787 = scalar_lea.vmem %s7, %s2786
      $region60: #{tpu_custom_call.1} parent=55 // pred_fallthru
        _
    $region56: #{tpu_custom_call.1} parent=5 // pred_fallthru
      _
  $region6: #{tpu_custom_call.1} parent=0 // loop_footer
    %s17 = sadd.s32 1, %s13
  $region7: #{tpu_custom_call.1} parent=0 // loop_footer_branch
    %12 = sbr.rel target = $region3
  $region8: #{tpu_custom_call.1} parent=0 // loop_exit
    _

</llo_original>
